<compile_context>
chip_gen: v6e
topology: v6e:2x2x1
jax: 0.10.0
libtpu: 0.0.40
codegen_flags: <defaults>
</compile_context>

<pallas_src>
import functools

import jax
import jax.numpy as jnp
from jax import lax
from jax.experimental import pallas as pl
from jax.experimental.pallas import tpu as pltpu

NUMBER_PERSONS = 2       # agents per scene (pairs)
OBS_LEN = 8              # args.obs_len
FUT_LEN = 12             # args.fut_len
HIDDEN = 8               # latent_space_size
STYLE_DIM = 8            # SimpleStyleEncoder.style_dim
STYLE_SEQ_LEN = 20       # fixed by nn.Linear(40, 16)

F = 64                                   # unified padded feature dim (sublanes)
ENC_IN = OBS_LEN * NUMBER_PERSONS * 2    # 32
STYLE_IN = 2 * STYLE_SEQ_LEN             # 40
TRAJ_OUT = NUMBER_PERSONS * 2 * FUT_LEN  # 48
LAT = 2 * HIDDEN                         # 16
H4 = 4 * HIDDEN                          # 32
N_W1 = 3                                 # style-pass packed (F,F) weights
N_B1 = 4                                 # style-pass biases
N_W2 = 10                                # main-pass packed (F,F) weights
N_B2 = 11                                # main-pass biases


def _relu(x):
    return jnp.maximum(x, 0.0)


# ----------------------------------------------------------------------------
# Pass 1: SimpleStyleEncoder — encoder MLP, masked style-mean partial sum,
# hat_classifier, L2 normalize.  Per-batch-column except the partial sum,
# which is emitted per tile and reduced (one op) in JAX.
# ----------------------------------------------------------------------------
def _style_kernel(B, TB, x_ref, w0_ref, w_ref, b_ref, low_ref, sum_ref):
    f32, bf16 = jnp.float32, jnp.bfloat16

    def lin(w, bi, v):
        # bf16 MXU operands, f32 accumulation; bias add stays on the f32 VPU.
        return jnp.dot(w, v.astype(bf16), preferred_element_type=f32) + b_ref[bi]

    x = x_ref[...]                                       # (STYLE_IN, TB) f32
    s = _relu(lin(w0_ref[...], 0, x))                    # Linear(40,16) + ReLU
    seq = lin(w_ref[0], 1, s)                            # Linear(16,8): rows 0:8
    seq8 = seq[:STYLE_DIM, :]

    # Masked per-tile column sum of style_seq (padded batch columns excluded).
    col = lax.broadcasted_iota(jnp.int32, (STYLE_DIM, TB), 1) + pl.program_id(0) * TB
    psum = jnp.sum(jnp.where(col < B, seq8, 0.0), axis=1, keepdims=True)   # (8,1)
    sum_ref[...] = jnp.broadcast_to(psum, (STYLE_DIM, 128))[None]

    # hat_classifier 8->8->8, then F.normalize(eps=1e-12):
    # x / max(||x||, eps) == x * rsqrt(max(ss, eps^2)).
    low = lin(w_ref[2], 3, _relu(lin(w_ref[1], 2, seq)))
    low = low[:STYLE_DIM, :]
    ss = jnp.sum(low * low, axis=0, keepdims=True)       # (1, TB)
    low_ref[...] = low * lax.rsqrt(jnp.maximum(ss, 1e-24))


# ----------------------------------------------------------------------------
# Pass 2: inv_encoder (SimpleEncoder MLP) + decoder.
# ConcatBlock style contributions are computed in-kernel from the (1,8) batch
# style (VPU mul + tiny lane reduce) — no per-call bias-slab rebuild in XLA.
# Zero-padding invariant: weight/bias rows beyond the real fan-out are zero, so
# padded activation rows stay exactly zero through ReLU and residual adds.
# ----------------------------------------------------------------------------
def _main_kernel(x_ref, w0_ref, w_ref, b_ref, ws_ref, bs_ref, out_ref):
    f32, bf16 = jnp.float32, jnp.bfloat16

    def lin(wi, bi, v):
        return jnp.dot(w_ref[wi], v.astype(bf16), preferred_element_type=f32) + b_ref[bi]

    x = x_ref[...]                                       # (ENC_IN, TB) f32
    # SimpleEncoder.mlp : 32 -> 32 -> 32 -> 16
    h = _relu(jnp.dot(w0_ref[...], x.astype(bf16), preferred_element_type=f32) + b_ref[0])
    h = _relu(lin(0, 1, h))
    lat = lin(1, 2, h)                                   # rows 0:16 valid

    # ConcatBlock style projections Ws @ batch_style (rows 0:16 / 0:32 valid).
    bs = bs_ref[...]                                     # (1, STYLE_DIM)
    sc0 = jnp.sum(ws_ref[0] * bs, axis=1, keepdims=True)   # (F, 1)
    sc1 = jnp.sum(ws_ref[1] * bs, axis=1, keepdims=True)   # (F, 1)

    # Decoder ConcatBlock 0, mlp1, ConcatBlock 1, mlp2
    out0 = lin(3, 4, _relu(lin(2, 3, lat) + sc0)) + lat
    x1 = lin(5, 6, _relu(lin(4, 5, out0)))
    out1 = lin(7, 8, _relu(lin(6, 7, x1) + sc1)) + x1
    y = lin(9, 10, _relu(lin(8, 9, out1)))
    out_ref[...] = y[:TRAJ_OUT, :]


# ----------------------------------------------------------------------------
# Parameter init (nn.Linear-style, stored (in, out) / (1, out)) and packing.
# ----------------------------------------------------------------------------
def _linear(key, fan_in, fan_out):
    k1, k2 = jax.random.split(key)
    bound = 1.0 / jnp.sqrt(jnp.float32(fan_in))
    w = jax.random.uniform(k1, (fan_in, fan_out), jnp.float32, -bound, bound)
    b = jax.random.uniform(k2, (1, fan_out), jnp.float32, -bound, bound)
    return w, b


def init_raw_params(key):
    ks = jax.random.split(key, 16)
    p = {}
    p["w0"], p["b0"] = _linear(ks[0], ENC_IN, H4)
    p["w1"], p["b1"] = _linear(ks[1], H4, H4)
    p["w2"], p["b2"] = _linear(ks[2], H4, LAT)
    p["we0"], p["be0"] = _linear(ks[3], STYLE_IN, 16)
    p["we1"], p["be1"] = _linear(ks[4], 16, STYLE_DIM)
    p["wh0"], p["bh0"] = _linear(ks[5], STYLE_DIM, 8)
    p["wh1"], p["bh1"] = _linear(ks[6], 8, 8)
    p["wc0a"], p["bc0a"] = _linear(ks[7], LAT + STYLE_DIM, LAT)
    p["wc0b"], p["bc0b"] = _linear(ks[8], LAT, LAT)
    p["wm1a"], p["bm1a"] = _linear(ks[9], LAT, H4)
    p["wm1b"], p["bm1b"] = _linear(ks[10], H4, H4)
    p["wc1a"], p["bc1a"] = _linear(ks[11], H4 + STYLE_DIM, H4)
    p["wc1b"], p["bc1b"] = _linear(ks[12], H4, H4)
    p["wm2a"], p["bm2a"] = _linear(ks[13], H4, TRAJ_OUT)
    p["wm2b"], p["bm2b"] = _linear(ks[14], TRAJ_OUT, TRAJ_OUT)
    return p


def _pad_w(w_in_out):
    """(in, out) weight -> transposed (out, in) zero-padded to (F, F)."""
    wt = w_in_out.T
    return jnp.zeros((F, F), jnp.float32).at[: wt.shape[0], : wt.shape[1]].set(wt)


def _pad_b(b_row):
    """(1, out) bias -> column zero-padded to (F, 1)."""
    return jnp.zeros((F, 1), jnp.float32).at[: b_row.shape[1], 0].set(b_row[0])


def pack_params(p):
    bf16 = jnp.bfloat16
    # ConcatBlock first-layer weights: concat order is (content, style) -> split rows.
    wc0x, wc0s = p["wc0a"][:LAT], p["wc0a"][LAT:]    # (16,16), (8,16)
    wc1x, wc1s = p["wc1a"][:H4], p["wc1a"][H4:]      # (32,32), (8,32)

    # --- style pass: first layer kept at natural fan-in (input is not padded) ---
    w1_0 = jnp.zeros((F, STYLE_IN), jnp.float32).at[:16, :].set(p["we0"].T).astype(bf16)
    w1 = jnp.stack([_pad_w(p["we1"]), _pad_w(p["wh0"]), _pad_w(p["wh1"])]).astype(bf16)
    b1 = jnp.stack([_pad_b(p["be0"]), _pad_b(p["be1"]),
                    _pad_b(p["bh0"]), _pad_b(p["bh1"])])

    # --- main pass ---
    w2_0 = jnp.zeros((F, ENC_IN), jnp.float32).at[:H4, :].set(p["w0"].T).astype(bf16)
    w2 = jnp.stack([
        _pad_w(p["w1"]), _pad_w(p["w2"]),
        _pad_w(wc0x), _pad_w(p["wc0b"]),
        _pad_w(p["wm1a"]), _pad_w(p["wm1b"]),
        _pad_w(wc1x), _pad_w(p["wc1b"]),
        _pad_w(p["wm2a"]), _pad_w(p["wm2b"]),
    ]).astype(bf16)
    b2 = jnp.stack([
        _pad_b(p["b0"]), _pad_b(p["b1"]), _pad_b(p["b2"]),
        _pad_b(p["bc0a"]), _pad_b(p["bc0b"]),
        _pad_b(p["bm1a"]), _pad_b(p["bm1b"]),
        _pad_b(p["bc1a"]), _pad_b(p["bc1b"]),
        _pad_b(p["bm2a"]), _pad_b(p["bm2b"]),
    ])
    # Style projection weights for the in-kernel fold: (2, F, STYLE_DIM), f32.
    ws = (jnp.zeros((2, F, STYLE_DIM), jnp.float32)
          .at[0, :LAT, :].set(wc0s.T)
          .at[1, :H4, :].set(wc1s.T))
    return {"w1_0": w1_0, "w1": w1, "b1": b1,
            "w2_0": w2_0, "w2": w2, "b2": b2, "ws": ws}


def _pick_tile(b):
    """Lane-dense batch tile (multiple of 128), capped at 1024, chosen so the
    grid has >= 2 blocks whenever B > 128 (keeps both v7x TensorCores busy)."""
    b128 = ((b + 127) // 128) * 128
    if b128 <= 128:
        return 128
    half = (b128 // 2) // 128 * 128
    return max(128, min(1024, half))


# ----------------------------------------------------------------------------
# Forward
# ----------------------------------------------------------------------------
@jax.jit
def causal_motion_forward(obs_traj, style_input, packed):
    """obs_traj: (OBS_LEN, NP*B, 2);  style_input: (STYLE_SEQ_LEN, NP*B, 2)."""
    f32 = jnp.float32
    B = obs_traj.shape[1] // NUMBER_PERSONS
    TB = _pick_tile(B)
    B_pad = ((B + TB - 1) // TB) * TB
    nt = B_pad // TB
    grid = (nt,)

    # ---- layout plumbing: (feature, batch); batch padded with a single pad ----
    # SimpleEncoder input: feature index = agent*OBS*2 + t*2 + coord
    e = obs_traj.reshape(OBS_LEN, B, NUMBER_PERSONS, 2).astype(f32)
    enc = jnp.transpose(e, (2, 0, 3, 1)).reshape(ENC_IN, B)
    enc = jnp.pad(enc, ((0, 0), (0, B_pad - B)))

    # SimpleStyleEncoder input: second agent of each pair, feature = t*2 + coord
    s = style_input.reshape(STYLE_SEQ_LEN, B, NUMBER_PERSONS, 2)[:, :, 1, :].astype(f32)
    sty = jnp.transpose(s, (0, 2, 1)).reshape(STYLE_IN, B)
    sty = jnp.pad(sty, ((0, 0), (0, B_pad - B)))

    def bspec(rows):
        return pl.BlockSpec((rows, TB), lambda i: (0, i))

    def const_spec(shape):
        nd = len(shape)
        return pl.BlockSpec(shape, lambda i, nd=nd: (0,) * nd)

    cparams = pltpu.CompilerParams(dimension_semantics=("parallel",),
                                   vmem_limit_bytes=32 * 1024 * 1024)

    # ---- pass 1: style encoder + masked style-sum + hat classifier + normalize
    # (weight/bias slabs have constant index_maps -> no per-step refetch DMA;
    #  pl.Buffered(1) intentionally not used, duplicate buffer is negligible).
    low, psums = pl.pallas_call(
        functools.partial(_style_kernel, B, TB),
        grid=grid,
        in_specs=[bspec(STYLE_IN),
                  const_spec((F, STYLE_IN)),
                  const_spec((N_W1, F, F)),
                  const_spec((N_B1, F, 1))],
        out_specs=(bspec(STYLE_DIM),
                   pl.BlockSpec((1, STYLE_DIM, 128), lambda i: (i, 0, 0))),
        out_shape=(jax.ShapeDtypeStruct((STYLE_DIM, B_pad), f32),
                   jax.ShapeDtypeStruct((nt, STYLE_DIM, 128), f32)),
        compiler_params=cparams,
    )(sty, packed["w1_0"], packed["w1"], packed["b1"])

    # ---- one-op glue: reduce per-tile partial sums -> batch-wide style mean ----
    batch_style = (jnp.sum(psums[:, :, 0], axis=0) / jnp.float32(B)).reshape(1, STYLE_DIM)

    # ---- pass 2: inv_encoder + decoder (style fold happens in-kernel) ----
    traj_t = pl.pallas_call(
        _main_kernel,
        grid=grid,
        in_specs=[bspec(ENC_IN),
                  const_spec((F, ENC_IN)),
                  const_spec((N_W2, F, F)),
                  const_spec((N_B2, F, 1)),
                  const_spec((2, F, STYLE_DIM)),
                  const_spec((1, STYLE_DIM))],
        out_specs=bspec(TRAJ_OUT),
        out_shape=jax.ShapeDtypeStruct((TRAJ_OUT, B_pad), f32),
        compiler_params=cparams,
    )(enc, packed["w2_0"], packed["w2"], packed["b2"], packed["ws"], batch_style)

    # ---- layout plumbing back to the PyTorch output layouts ----
    # traj_t rows: f = agent*FUT*2 + t*2 + coord  ->  (FUT, B*NP, 2)
    traj = traj_t[:, :B].reshape(NUMBER_PERSONS, FUT_LEN, 2, B)
    traj = jnp.transpose(traj, (1, 3, 0, 2)).reshape(FUT_LEN, B * NUMBER_PERSONS, 2)
    low_dim = jnp.transpose(low[:, :B])                                  # (B, 8)
    return traj, low_dim


# ----------------------------------------------------------------------------
# Pure-JAX reference (same math, original (batch, feature) layout)
# ----------------------------------------------------------------------------
def reference_forward(obs_traj, style_input, p):
    B = obs_traj.shape[1] // NUMBER_PERSONS
    relu = lambda v: jnp.maximum(v, 0.0)

    enc_in = jnp.transpose(obs_traj.reshape(OBS_LEN, B, NUMBER_PERSONS, 2),
                           (1, 2, 0, 3)).reshape(B, ENC_IN)
    st = style_input.reshape(STYLE_SEQ_LEN, B, NUMBER_PERSONS, 2)[:, :, 1, :]
    style_in = jnp.transpose(st, (1, 0, 2)).reshape(B, STYLE_IN)

    lat = relu(relu(enc_in @ p["w0"] + p["b0"]) @ p["w1"] + p["b1"]) @ p["w2"] + p["b2"]
    style_seq = relu(style_in @ p["we0"] + p["be0"]) @ p["we1"] + p["be1"]
    batch_style = jnp.mean(style_seq, axis=0, keepdims=True)
    low = relu(style_seq @ p["wh0"] + p["bh0"]) @ p["wh1"] + p["bh1"]
    low = low / jnp.maximum(jnp.sqrt(jnp.sum(low * low, axis=1, keepdims=True)), 1e-12)

    wc0x, wc0s = p["wc0a"][:LAT], p["wc0a"][LAT:]
    wc1x, wc1s = p["wc1a"][:H4], p["wc1a"][H4:]
    pre0 = lat @ wc0x + batch_style @ wc0s + p["bc0a"]
    out0 = relu(pre0) @ p["wc0b"] + p["bc0b"] + lat
    x1 = relu(out0 @ p["wm1a"] + p["bm1a"]) @ p["wm1b"] + p["bm1b"]
    pre1 = x1 @ wc1x + batch_style @ wc1s + p["bc1a"]
    out1 = relu(pre1) @ p["wc1b"] + p["bc1b"] + x1
    traj = relu(out1 @ p["wm2a"] + p["bm2a"]) @ p["wm2b"] + p["bm2b"]
    traj = jnp.transpose(traj.reshape(B * NUMBER_PERSONS, FUT_LEN, 2), (1, 0, 2))
    return traj, low


def _round_weights_to_bf16(p):
    """Reference params with weights rounded like the packed bf16 slabs."""
    return {k: (v.astype(jnp.bfloat16).astype(jnp.float32) if k.startswith("w") else v)
            for k, v in p.items()}


if __name__ == "__main__":
    key = jax.random.PRNGKey(0)
    kp, kdata = jax.random.split(key)

    raw = init_raw_params(kp)
    packed = pack_params(raw)
    raw_q = _round_weights_to_bf16(raw)

    # B=4   -> TB=128, grid=(1,)   (tiny-shape smoke test)
    # B=160 -> TB=128, grid=(2,)   (exercises batch tiling, masked style mean,
    #                               padded columns in the last tile, 2-TC path)
    for B in (4, 160):
        kx, ks = jax.random.split(jax.random.fold_in(kdata, B))
        obs_traj = jax.random.normal(kx, (OBS_LEN, NUMBER_PERSONS * B, 2), jnp.float32)
        style_input = jax.random.normal(ks, (STYLE_SEQ_LEN, NUMBER_PERSONS * B, 2),
                                        jnp.float32)

        traj, low_dim = causal_motion_forward(obs_traj, style_input, packed)
        traj, low_dim = jax.block_until_ready((traj, low_dim))

        assert traj.shape == (FUT_LEN, NUMBER_PERSONS * B, 2)
        assert low_dim.shape == (B, STYLE_DIM)

        # Tight check vs a reference that sees the same bf16-rounded weights
        # (isolates the kernel math from the intentional weight quantization).
        rt, rl = reference_forward(obs_traj, style_input, raw_q)
        assert jnp.allclose(traj, rt, rtol=1e-2, atol=1e-2), \
            float(jnp.max(jnp.abs(traj - rt)))
        assert jnp.allclose(low_dim, rl, rtol=1e-2, atol=1e-2), \
            float(jnp.max(jnp.abs(low_dim - rl)))

        # Loose sanity check vs the exact f32 reference.
        ft, fl = reference_forward(obs_traj, style_input, raw)
        assert jnp.allclose(traj, ft, rtol=5e-2, atol=5e-2), \
            float(jnp.max(jnp.abs(traj - ft)))
        assert jnp.allclose(low_dim, fl, rtol=5e-2, atol=5e-2), \
            float(jnp.max(jnp.abs(low_dim - fl)))

    print("KERNEL_OK")
</pallas_src>

<mosaic_0001>
module attributes {stable_mosaic.version = 11 : i64} {
  func.func @_style_kernel(%arg0: i32, %arg1: memref<40x128xf32, #tpu.memory_space<vmem>>, %arg2: memref<64x40xbf16, #tpu.memory_space<vmem>>, %arg3: memref<3x64x64xbf16, #tpu.memory_space<vmem>>, %arg4: memref<4x64x1xf32, #tpu.memory_space<vmem>>, %arg5: memref<8x128xf32, #tpu.memory_space<vmem>>, %arg6: memref<1x8x128xf32, #tpu.memory_space<vmem>>) attributes {dimension_semantics = [#tpu.dimension_semantics<parallel>], iteration_bounds = array<i64: 1>, scalar_prefetch = 0 : i64, scratch_operands = 0 : i64, tpu.core_type = #tpu.core_type<tc>, window_params = [{transform_indices = @transform_0, window_bounds = array<i64: 40, 128>}, {pipeline_mode = #tpu.pipeline_mode<synchronous>, transform_indices = @transform_1, window_bounds = array<i64: 64, 40>}, {pipeline_mode = #tpu.pipeline_mode<synchronous>, transform_indices = @transform_2, window_bounds = array<i64: 3, 64, 64>}, {pipeline_mode = #tpu.pipeline_mode<synchronous>, transform_indices = @transform_3, window_bounds = array<i64: 4, 64, 1>}, {transform_indices = @transform_4, window_bounds = array<i64: 8, 128>}, {transform_indices = @transform_5, window_bounds = array<i64: 1, 8, 128>}]} {
    %c0 = arith.constant 0 : index
    %c0_0 = arith.constant 0 : index
    %0 = vector.load %arg1[%c0, %c0_0] : memref<40x128xf32, #tpu.memory_space<vmem>>, vector<40x128xf32>
    %c0_1 = arith.constant 0 : index
    %c0_2 = arith.constant 0 : index
    %1 = vector.load %arg2[%c0_1, %c0_2] : memref<64x40xbf16, #tpu.memory_space<vmem>>, vector<64x40xbf16>
    %2 = arith.truncf %0 : vector<40x128xf32> to vector<40x128xbf16>
    %cst = arith.constant dense<0.000000e+00> : vector<64x128xf32>
    %3 = tpu.matmul %1, %2, %cst {dimension_numbers = #tpu.dot_dimension_numbers<[1], [0], [0], [1], [0, 0, 1, 1], [], []>} : vector<64x40xbf16>, vector<40x128xbf16>, vector<64x128xf32> -> vector<64x128xf32>
    %c0_3 = arith.constant 0 : index
    %c0_4 = arith.constant 0 : index
    %c0_5 = arith.constant 0 : index
    %4 = vector.load %arg4[%c0_3, %c0_4, %c0_5] : memref<4x64x1xf32, #tpu.memory_space<vmem>>, vector<1x64x1xf32>
    %5 = vector.shape_cast %4 : vector<1x64x1xf32> to vector<64x1xf32>
    %6 = vector.broadcast %5 : vector<64x1xf32> to vector<64x128xf32>
    %7 = arith.addf %3, %6 : vector<64x128xf32>
    %cst_6 = arith.constant 0.000000e+00 : f32
    %8 = vector.broadcast %cst_6 : f32 to vector<64x128xf32>
    %9 = arith.maximumf %7, %8 : vector<64x128xf32>
    %c0_7 = arith.constant 0 : index
    %c0_8 = arith.constant 0 : index
    %c0_9 = arith.constant 0 : index
    %10 = vector.load %arg3[%c0_7, %c0_8, %c0_9] : memref<3x64x64xbf16, #tpu.memory_space<vmem>>, vector<1x64x64xbf16>
    %11 = vector.shape_cast %10 : vector<1x64x64xbf16> to vector<64x64xbf16>
    %12 = arith.truncf %9 : vector<64x128xf32> to vector<64x128xbf16>
    %cst_10 = arith.constant dense<0.000000e+00> : vector<64x128xf32>
    %13 = tpu.matmul %11, %12, %cst_10 {dimension_numbers = #tpu.dot_dimension_numbers<[1], [0], [0], [1], [0, 0, 1, 1], [], []>} : vector<64x64xbf16>, vector<64x128xbf16>, vector<64x128xf32> -> vector<64x128xf32>
    %c1 = arith.constant 1 : index
    %c0_11 = arith.constant 0 : index
    %c0_12 = arith.constant 0 : index
    %14 = vector.load %arg4[%c1, %c0_11, %c0_12] : memref<4x64x1xf32, #tpu.memory_space<vmem>>, vector<1x64x1xf32>
    %15 = vector.shape_cast %14 : vector<1x64x1xf32> to vector<64x1xf32>
    %16 = vector.broadcast %15 : vector<64x1xf32> to vector<64x128xf32>
    %17 = arith.addf %13, %16 : vector<64x128xf32>
    %18 = vector.extract_strided_slice %17 {offsets = [0, 0], sizes = [8, 128], strides = [1, 1]} : vector<64x128xf32> to vector<8x128xf32>
    %19 = tpu.iota {dimensions = array<i32: 1>} : vector<8x128xi32>
    %c128_i32 = arith.constant 128 : i32
    %20 = arith.muli %arg0, %c128_i32 : i32
    %21 = vector.broadcast %20 : i32 to vector<8x128xi32>
    %22 = arith.addi %19, %21 : vector<8x128xi32>
    %c4_i32 = arith.constant 4 : i32
    %23 = vector.broadcast %c4_i32 : i32 to vector<8x128xi32>
    %24 = arith.cmpi slt, %22, %23 : vector<8x128xi32>
    %cst_13 = arith.constant 0.000000e+00 : f32
    %25 = vector.broadcast %cst_13 : f32 to vector<8x128xf32>
    %26 = arith.select %24, %18, %25 : vector<8x128xi1>, vector<8x128xf32>
    %cst_14 = arith.constant dense<0.000000e+00> : vector<8xf32>
    %27 = vector.multi_reduction <add>, %26, %cst_14 [1] : vector<8x128xf32> to vector<8xf32>
    %28 = vector.shape_cast %27 : vector<8xf32> to vector<8x1xf32>
    %29 = vector.shape_cast %28 : vector<8x1xf32> to vector<8x1xf32>
    %30 = vector.broadcast %29 : vector<8x1xf32> to vector<8x128xf32>
    %31 = vector.shape_cast %30 : vector<8x128xf32> to vector<1x8x128xf32>
    %c0_15 = arith.constant 0 : index
    %c0_16 = arith.constant 0 : index
    %c0_17 = arith.constant 0 : index
    %32 = vector.load %arg6[%c0_15, %c0_16, %c0_17] : memref<1x8x128xf32, #tpu.memory_space<vmem>>, vector<1x8x128xf32>
    tpu.vector_store %arg6[%c0_15, %c0_16, %c0_17], %31 {strides = array<i32>} : memref<1x8x128xf32, #tpu.memory_space<vmem>>, vector<1x8x128xf32>,
    %c2 = arith.constant 2 : index
    %c0_18 = arith.constant 0 : index
    %c0_19 = arith.constant 0 : index
    %33 = vector.load %arg3[%c2, %c0_18, %c0_19] : memref<3x64x64xbf16, #tpu.memory_space<vmem>>, vector<1x64x64xbf16>
    %34 = vector.shape_cast %33 : vector<1x64x64xbf16> to vector<64x64xbf16>
    %c1_20 = arith.constant 1 : index
    %c0_21 = arith.constant 0 : index
    %c0_22 = arith.constant 0 : index
    %35 = vector.load %arg3[%c1_20, %c0_21, %c0_22] : memref<3x64x64xbf16, #tpu.memory_space<vmem>>, vector<1x64x64xbf16>
    %36 = vector.shape_cast %35 : vector<1x64x64xbf16> to vector<64x64xbf16>
    %37 = arith.truncf %17 : vector<64x128xf32> to vector<64x128xbf16>
    %cst_23 = arith.constant dense<0.000000e+00> : vector<64x128xf32>
    %38 = tpu.matmul %36, %37, %cst_23 {dimension_numbers = #tpu.dot_dimension_numbers<[1], [0], [0], [1], [0, 0, 1, 1], [], []>} : vector<64x64xbf16>, vector<64x128xbf16>, vector<64x128xf32> -> vector<64x128xf32>
    %c2_24 = arith.constant 2 : index
    %c0_25 = arith.constant 0 : index
    %c0_26 = arith.constant 0 : index
    %39 = vector.load %arg4[%c2_24, %c0_25, %c0_26] : memref<4x64x1xf32, #tpu.memory_space<vmem>>, vector<1x64x1xf32>
    %40 = vector.shape_cast %39 : vector<1x64x1xf32> to vector<64x1xf32>
    %41 = vector.broadcast %40 : vector<64x1xf32> to vector<64x128xf32>
    %42 = arith.addf %38, %41 : vector<64x128xf32>
    %cst_27 = arith.constant 0.000000e+00 : f32
    %43 = vector.broadcast %cst_27 : f32 to vector<64x128xf32>
    %44 = arith.maximumf %42, %43 : vector<64x128xf32>
    %45 = arith.truncf %44 : vector<64x128xf32> to vector<64x128xbf16>
    %cst_28 = arith.constant dense<0.000000e+00> : vector<64x128xf32>
    %46 = tpu.matmul %34, %45, %cst_28 {dimension_numbers = #tpu.dot_dimension_numbers<[1], [0], [0], [1], [0, 0, 1, 1], [], []>} : vector<64x64xbf16>, vector<64x128xbf16>, vector<64x128xf32> -> vector<64x128xf32>
    %c3 = arith.constant 3 : index
    %c0_29 = arith.constant 0 : index
    %c0_30 = arith.constant 0 : index
    %47 = vector.load %arg4[%c3, %c0_29, %c0_30] : memref<4x64x1xf32, #tpu.memory_space<vmem>>, vector<1x64x1xf32>
    %48 = vector.shape_cast %47 : vector<1x64x1xf32> to vector<64x1xf32>
    %49 = vector.broadcast %48 : vector<64x1xf32> to vector<64x128xf32>
    %50 = arith.addf %46, %49 : vector<64x128xf32>
    %51 = vector.extract_strided_slice %50 {offsets = [0, 0], sizes = [8, 128], strides = [1, 1]} : vector<64x128xf32> to vector<8x128xf32>
    %52 = arith.mulf %51, %51 : vector<8x128xf32>
    %cst_31 = arith.constant dense<0.000000e+00> : vector<128xf32>
    %53 = vector.multi_reduction <add>, %52, %cst_31 [0] : vector<8x128xf32> to vector<128xf32>
    %54 = vector.shape_cast %53 : vector<128xf32> to vector<1x128xf32>
    %cst_32 = arith.constant 1.000000e-24 : f32
    %55 = vector.broadcast %cst_32 : f32 to vector<1x128xf32>
    %56 = arith.maximumf %54, %55 : vector<1x128xf32>
    %57 = math.rsqrt %56 : vector<1x128xf32>
    %58 = vector.broadcast %57 : vector<1x128xf32> to vector<8x128xf32>
    %59 = arith.mulf %51, %58 : vector<8x128xf32>
    %c0_33 = arith.constant 0 : index
    %c0_34 = arith.constant 0 : index
    %60 = vector.load %arg5[%c0_33, %c0_34] : memref<8x128xf32, #tpu.memory_space<vmem>>, vector<8x128xf32>
    tpu.vector_store %arg5[%c0_33, %c0_34], %59 {strides = array<i32>} : memref<8x128xf32, #tpu.memory_space<vmem>>, vector<8x128xf32>,
    return
  }
  func.func @transform_0(%arg0: i32) -> (i32, i32) {
    %c0_i32 = arith.constant 0 : i32
    %c0_i32_0 = arith.constant 0 : i32
    return %c0_i32, %arg0 : i32, i32
  }
  func.func @transform_1(%arg0: i32) -> (i32, i32) {
    %c0_i32 = arith.constant 0 : i32
    %c0_i32_0 = arith.constant 0 : i32
    %c0_i32_1 = arith.constant 0 : i32
    return %c0_i32, %c0_i32_0 : i32, i32
  }
  func.func @transform_2(%arg0: i32) -> (i32, i32, i32) {
    %c0_i32 = arith.constant 0 : i32
    %c0_i32_0 = arith.constant 0 : i32
    %c0_i32_1 = arith.constant 0 : i32
    %c0_i32_2 = arith.constant 0 : i32
    return %c0_i32, %c0_i32_0, %c0_i32_1 : i32, i32, i32
  }
  func.func @transform_3(%arg0: i32) -> (i32, i32, i32) {
    %c0_i32 = arith.constant 0 : i32
    %c0_i32_0 = arith.constant 0 : i32
    %c0_i32_1 = arith.constant 0 : i32
    %c0_i32_2 = arith.constant 0 : i32
    return %c0_i32, %c0_i32_0, %c0_i32_1 : i32, i32, i32
  }
  func.func @transform_4(%arg0: i32) -> (i32, i32) {
    %c0_i32 = arith.constant 0 : i32
    %c0_i32_0 = arith.constant 0 : i32
    return %c0_i32, %arg0 : i32, i32
  }
  func.func @transform_5(%arg0: i32) -> (i32, i32, i32) {
    %c0_i32 = arith.constant 0 : i32
    %c0_i32_0 = arith.constant 0 : i32
    %c0_i32_1 = arith.constant 0 : i32
    return %arg0, %c0_i32, %c0_i32_0 : i32, i32, i32
  }
}

module attributes {stable_mosaic.version = 11 : i64} {
  func.func @_main_kernel(%arg0: i32, %arg1: memref<32x128xf32, #tpu.memory_space<vmem>>, %arg2: memref<64x32xbf16, #tpu.memory_space<vmem>>, %arg3: memref<10x64x64xbf16, #tpu.memory_space<vmem>>, %arg4: memref<11x64x1xf32, #tpu.memory_space<vmem>>, %arg5: memref<2x64x8xf32, #tpu.memory_space<vmem>>, %arg6: memref<1x8xf32, #tpu.memory_space<vmem>>, %arg7: memref<48x128xf32, #tpu.memory_space<vmem>>) attributes {dimension_semantics = [#tpu.dimension_semantics<parallel>], iteration_bounds = array<i64: 1>, scalar_prefetch = 0 : i64, scratch_operands = 0 : i64, tpu.core_type = #tpu.core_type<tc>, window_params = [{transform_indices = @transform_0, window_bounds = array<i64: 32, 128>}, {pipeline_mode = #tpu.pipeline_mode<synchronous>, transform_indices = @transform_1, window_bounds = array<i64: 64, 32>}, {pipeline_mode = #tpu.pipeline_mode<synchronous>, transform_indices = @transform_2, window_bounds = array<i64: 10, 64, 64>}, {pipeline_mode = #tpu.pipeline_mode<synchronous>, transform_indices = @transform_3, window_bounds = array<i64: 11, 64, 1>}, {pipeline_mode = #tpu.pipeline_mode<synchronous>, transform_indices = @transform_4, window_bounds = array<i64: 2, 64, 8>}, {pipeline_mode = #tpu.pipeline_mode<synchronous>, transform_indices = @transform_5, window_bounds = array<i64: 1, 8>}, {transform_indices = @transform_6, window_bounds = array<i64: 48, 128>}]} {
    %c0 = arith.constant 0 : index
    %c0_0 = arith.constant 0 : index
    %0 = vector.load %arg1[%c0, %c0_0] : memref<32x128xf32, #tpu.memory_space<vmem>>, vector<32x128xf32>
    %c0_1 = arith.constant 0 : index
    %c0_2 = arith.constant 0 : index
    %1 = vector.load %arg2[%c0_1, %c0_2] : memref<64x32xbf16, #tpu.memory_space<vmem>>, vector<64x32xbf16>
    %2 = arith.truncf %0 : vector<32x128xf32> to vector<32x128xbf16>
    %cst = arith.constant dense<0.000000e+00> : vector<64x128xf32>
    %3 = tpu.matmul %1, %2, %cst {dimension_numbers = #tpu.dot_dimension_numbers<[1], [0], [0], [1], [0, 0, 1, 1], [], []>} : vector<64x32xbf16>, vector<32x128xbf16>, vector<64x128xf32> -> vector<64x128xf32>
    %c0_3 = arith.constant 0 : index
    %c0_4 = arith.constant 0 : index
    %c0_5 = arith.constant 0 : index
    %4 = vector.load %arg4[%c0_3, %c0_4, %c0_5] : memref<11x64x1xf32, #tpu.memory_space<vmem>>, vector<1x64x1xf32>
    %5 = vector.shape_cast %4 : vector<1x64x1xf32> to vector<64x1xf32>
    %6 = vector.broadcast %5 : vector<64x1xf32> to vector<64x128xf32>
    %7 = arith.addf %3, %6 : vector<64x128xf32>
    %cst_6 = arith.constant 0.000000e+00 : f32
    %8 = vector.broadcast %cst_6 : f32 to vector<64x128xf32>
    %9 = arith.maximumf %7, %8 : vector<64x128xf32>
    %c0_7 = arith.constant 0 : index
    %c0_8 = arith.constant 0 : index
    %c0_9 = arith.constant 0 : index
    %10 = vector.load %arg3[%c0_7, %c0_8, %c0_9] : memref<10x64x64xbf16, #tpu.memory_space<vmem>>, vector<1x64x64xbf16>
    %11 = vector.shape_cast %10 : vector<1x64x64xbf16> to vector<64x64xbf16>
    %12 = arith.truncf %9 : vector<64x128xf32> to vector<64x128xbf16>
    %cst_10 = arith.constant dense<0.000000e+00> : vector<64x128xf32>
    %13 = tpu.matmul %11, %12, %cst_10 {dimension_numbers = #tpu.dot_dimension_numbers<[1], [0], [0], [1], [0, 0, 1, 1], [], []>} : vector<64x64xbf16>, vector<64x128xbf16>, vector<64x128xf32> -> vector<64x128xf32>
    %c1 = arith.constant 1 : index
    %c0_11 = arith.constant 0 : index
    %c0_12 = arith.constant 0 : index
    %14 = vector.load %arg4[%c1, %c0_11, %c0_12] : memref<11x64x1xf32, #tpu.memory_space<vmem>>, vector<1x64x1xf32>
    %15 = vector.shape_cast %14 : vector<1x64x1xf32> to vector<64x1xf32>
    %16 = vector.broadcast %15 : vector<64x1xf32> to vector<64x128xf32>
    %17 = arith.addf %13, %16 : vector<64x128xf32>
    %cst_13 = arith.constant 0.000000e+00 : f32
    %18 = vector.broadcast %cst_13 : f32 to vector<64x128xf32>
    %19 = arith.maximumf %17, %18 : vector<64x128xf32>
    %c1_14 = arith.constant 1 : index
    %c0_15 = arith.constant 0 : index
    %c0_16 = arith.constant 0 : index
    %20 = vector.load %arg3[%c1_14, %c0_15, %c0_16] : memref<10x64x64xbf16, #tpu.memory_space<vmem>>, vector<1x64x64xbf16>
    %21 = vector.shape_cast %20 : vector<1x64x64xbf16> to vector<64x64xbf16>
    %22 = arith.truncf %19 : vector<64x128xf32> to vector<64x128xbf16>
    %cst_17 = arith.constant dense<0.000000e+00> : vector<64x128xf32>
    %23 = tpu.matmul %21, %22, %cst_17 {dimension_numbers = #tpu.dot_dimension_numbers<[1], [0], [0], [1], [0, 0, 1, 1], [], []>} : vector<64x64xbf16>, vector<64x128xbf16>, vector<64x128xf32> -> vector<64x128xf32>
    %c2 = arith.constant 2 : index
    %c0_18 = arith.constant 0 : index
    %c0_19 = arith.constant 0 : index
    %24 = vector.load %arg4[%c2, %c0_18, %c0_19] : memref<11x64x1xf32, #tpu.memory_space<vmem>>, vector<1x64x1xf32>
    %25 = vector.shape_cast %24 : vector<1x64x1xf32> to vector<64x1xf32>
    %26 = vector.broadcast %25 : vector<64x1xf32> to vector<64x128xf32>
    %27 = arith.addf %23, %26 : vector<64x128xf32>
    %c0_20 = arith.constant 0 : index
    %c0_21 = arith.constant 0 : index
    %28 = vector.load %arg6[%c0_20, %c0_21] : memref<1x8xf32, #tpu.memory_space<vmem>>, vector<1x8xf32>
    %c0_22 = arith.constant 0 : index
    %c0_23 = arith.constant 0 : index
    %c0_24 = arith.constant 0 : index
    %29 = vector.load %arg5[%c0_22, %c0_23, %c0_24] : memref<2x64x8xf32, #tpu.memory_space<vmem>>, vector<1x64x8xf32>
    %30 = vector.shape_cast %29 : vector<1x64x8xf32> to vector<64x8xf32>
    %31 = vector.broadcast %28 : vector<1x8xf32> to vector<64x8xf32>
    %32 = arith.mulf %30, %31 : vector<64x8xf32>
    %cst_25 = arith.constant dense<0.000000e+00> : vector<64xf32>
    %33 = vector.multi_reduction <add>, %32, %cst_25 [1] : vector<64x8xf32> to vector<64xf32>
    %34 = vector.shape_cast %33 : vector<64xf32> to vector<64x1xf32>
    %c1_26 = arith.constant 1 : index
    %c0_27 = arith.constant 0 : index
    %c0_28 = arith.constant 0 : index
    %35 = vector.load %arg5[%c1_26, %c0_27, %c0_28] : memref<2x64x8xf32, #tpu.memory_space<vmem>>, vector<1x64x8xf32>
    %36 = vector.shape_cast %35 : vector<1x64x8xf32> to vector<64x8xf32>
    %37 = vector.broadcast %28 : vector<1x8xf32> to vector<64x8xf32>
    %38 = arith.mulf %36, %37 : vector<64x8xf32>
    %cst_29 = arith.constant dense<0.000000e+00> : vector<64xf32>
    %39 = vector.multi_reduction <add>, %38, %cst_29 [1] : vector<64x8xf32> to vector<64xf32>
    %40 = vector.shape_cast %39 : vector<64xf32> to vector<64x1xf32>
    %c2_30 = arith.constant 2 : index
    %c0_31 = arith.constant 0 : index
    %c0_32 = arith.constant 0 : index
    %41 = vector.load %arg3[%c2_30, %c0_31, %c0_32] : memref<10x64x64xbf16, #tpu.memory_space<vmem>>, vector<1x64x64xbf16>
    %42 = vector.shape_cast %41 : vector<1x64x64xbf16> to vector<64x64xbf16>
    %43 = arith.truncf %27 : vector<64x128xf32> to vector<64x128xbf16>
    %cst_33 = arith.constant dense<0.000000e+00> : vector<64x128xf32>
    %44 = tpu.matmul %42, %43, %cst_33 {dimension_numbers = #tpu.dot_dimension_numbers<[1], [0], [0], [1], [0, 0, 1, 1], [], []>} : vector<64x64xbf16>, vector<64x128xbf16>, vector<64x128xf32> -> vector<64x128xf32>
    %c3 = arith.constant 3 : index
    %c0_34 = arith.constant 0 : index
    %c0_35 = arith.constant 0 : index
    %45 = vector.load %arg4[%c3, %c0_34, %c0_35] : memref<11x64x1xf32, #tpu.memory_space<vmem>>, vector<1x64x1xf32>
    %46 = vector.shape_cast %45 : vector<1x64x1xf32> to vector<64x1xf32>
    %47 = vector.broadcast %46 : vector<64x1xf32> to vector<64x128xf32>
    %48 = arith.addf %44, %47 : vector<64x128xf32>
    %49 = vector.broadcast %34 : vector<64x1xf32> to vector<64x128xf32>
    %50 = arith.addf %48, %49 : vector<64x128xf32>
    %cst_36 = arith.constant 0.000000e+00 : f32
    %51 = vector.broadcast %cst_36 : f32 to vector<64x128xf32>
    %52 = arith.maximumf %50, %51 : vector<64x128xf32>
    %c3_37 = arith.constant 3 : index
    %c0_38 = arith.constant 0 : index
    %c0_39 = arith.constant 0 : index
    %53 = vector.load %arg3[%c3_37, %c0_38, %c0_39] : memref<10x64x64xbf16, #tpu.memory_space<vmem>>, vector<1x64x64xbf16>
    %54 = vector.shape_cast %53 : vector<1x64x64xbf16> to vector<64x64xbf16>
    %55 = arith.truncf %52 : vector<64x128xf32> to vector<64x128xbf16>
    %cst_40 = arith.constant dense<0.000000e+00> : vector<64x128xf32>
    %56 = tpu.matmul %54, %55, %cst_40 {dimension_numbers = #tpu.dot_dimension_numbers<[1], [0], [0], [1], [0, 0, 1, 1], [], []>} : vector<64x64xbf16>, vector<64x128xbf16>, vector<64x128xf32> -> vector<64x128xf32>
    %c4 = arith.constant 4 : index
    %c0_41 = arith.constant 0 : index
    %c0_42 = arith.constant 0 : index
    %57 = vector.load %arg4[%c4, %c0_41, %c0_42] : memref<11x64x1xf32, #tpu.memory_space<vmem>>, vector<1x64x1xf32>
    %58 = vector.shape_cast %57 : vector<1x64x1xf32> to vector<64x1xf32>
    %59 = vector.broadcast %58 : vector<64x1xf32> to vector<64x128xf32>
    %60 = arith.addf %56, %59 : vector<64x128xf32>
    %61 = arith.addf %60, %27 : vector<64x128xf32>
    %c4_43 = arith.constant 4 : index
    %c0_44 = arith.constant 0 : index
    %c0_45 = arith.constant 0 : index
    %62 = vector.load %arg3[%c4_43, %c0_44, %c0_45] : memref<10x64x64xbf16, #tpu.memory_space<vmem>>, vector<1x64x64xbf16>
    %63 = vector.shape_cast %62 : vector<1x64x64xbf16> to vector<64x64xbf16>
    %64 = arith.truncf %61 : vector<64x128xf32> to vector<64x128xbf16>
    %cst_46 = arith.constant dense<0.000000e+00> : vector<64x128xf32>
    %65 = tpu.matmul %63, %64, %cst_46 {dimension_numbers = #tpu.dot_dimension_numbers<[1], [0], [0], [1], [0, 0, 1, 1], [], []>} : vector<64x64xbf16>, vector<64x128xbf16>, vector<64x128xf32> -> vector<64x128xf32>
    %c5 = arith.constant 5 : index
    %c0_47 = arith.constant 0 : index
    %c0_48 = arith.constant 0 : index
    %66 = vector.load %arg4[%c5, %c0_47, %c0_48] : memref<11x64x1xf32, #tpu.memory_space<vmem>>, vector<1x64x1xf32>
    %67 = vector.shape_cast %66 : vector<1x64x1xf32> to vector<64x1xf32>
    %68 = vector.broadcast %67 : vector<64x1xf32> to vector<64x128xf32>
    %69 = arith.addf %65, %68 : vector<64x128xf32>
    %cst_49 = arith.constant 0.000000e+00 : f32
    %70 = vector.broadcast %cst_49 : f32 to vector<64x128xf32>
    %71 = arith.maximumf %69, %70 : vector<64x128xf32>
    %c5_50 = arith.constant 5 : index
    %c0_51 = arith.constant 0 : index
    %c0_52 = arith.constant 0 : index
    %72 = vector.load %arg3[%c5_50, %c0_51, %c0_52] : memref<10x64x64xbf16, #tpu.memory_space<vmem>>, vector<1x64x64xbf16>
    %73 = vector.shape_cast %72 : vector<1x64x64xbf16> to vector<64x64xbf16>
    %74 = arith.truncf %71 : vector<64x128xf32> to vector<64x128xbf16>
    %cst_53 = arith.constant dense<0.000000e+00> : vector<64x128xf32>
    %75 = tpu.matmul %73, %74, %cst_53 {dimension_numbers = #tpu.dot_dimension_numbers<[1], [0], [0], [1], [0, 0, 1, 1], [], []>} : vector<64x64xbf16>, vector<64x128xbf16>, vector<64x128xf32> -> vector<64x128xf32>
    %c6 = arith.constant 6 : index
    %c0_54 = arith.constant 0 : index
    %c0_55 = arith.constant 0 : index
    %76 = vector.load %arg4[%c6, %c0_54, %c0_55] : memref<11x64x1xf32, #tpu.memory_space<vmem>>, vector<1x64x1xf32>
    %77 = vector.shape_cast %76 : vector<1x64x1xf32> to vector<64x1xf32>
    %78 = vector.broadcast %77 : vector<64x1xf32> to vector<64x128xf32>
    %79 = arith.addf %75, %78 : vector<64x128xf32>
    %c6_56 = arith.constant 6 : index
    %c0_57 = arith.constant 0 : index
    %c0_58 = arith.constant 0 : index
    %80 = vector.load %arg3[%c6_56, %c0_57, %c0_58] : memref<10x64x64xbf16, #tpu.memory_space<vmem>>, vector<1x64x64xbf16>
    %81 = vector.shape_cast %80 : vector<1x64x64xbf16> to vector<64x64xbf16>
    %82 = arith.truncf %79 : vector<64x128xf32> to vector<64x128xbf16>
    %cst_59 = arith.constant dense<0.000000e+00> : vector<64x128xf32>
    %83 = tpu.matmul %81, %82, %cst_59 {dimension_numbers = #tpu.dot_dimension_numbers<[1], [0], [0], [1], [0, 0, 1, 1], [], []>} : vector<64x64xbf16>, vector<64x128xbf16>, vector<64x128xf32> -> vector<64x128xf32>
    %c7 = arith.constant 7 : index
    %c0_60 = arith.constant 0 : index
    %c0_61 = arith.constant 0 : index
    %84 = vector.load %arg4[%c7, %c0_60, %c0_61] : memref<11x64x1xf32, #tpu.memory_space<vmem>>, vector<1x64x1xf32>
    %85 = vector.shape_cast %84 : vector<1x64x1xf32> to vector<64x1xf32>
    %86 = vector.broadcast %85 : vector<64x1xf32> to vector<64x128xf32>
    %87 = arith.addf %83, %86 : vector<64x128xf32>
    %88 = vector.broadcast %40 : vector<64x1xf32> to vector<64x128xf32>
    %89 = arith.addf %87, %88 : vector<64x128xf32>
    %cst_62 = arith.constant 0.000000e+00 : f32
    %90 = vector.broadcast %cst_62 : f32 to vector<64x128xf32>
    %91 = arith.maximumf %89, %90 : vector<64x128xf32>
    %c7_63 = arith.constant 7 : index
    %c0_64 = arith.constant 0 : index
    %c0_65 = arith.constant 0 : index
    %92 = vector.load %arg3[%c7_63, %c0_64, %c0_65] : memref<10x64x64xbf16, #tpu.memory_space<vmem>>, vector<1x64x64xbf16>
    %93 = vector.shape_cast %92 : vector<1x64x64xbf16> to vector<64x64xbf16>
    %94 = arith.truncf %91 : vector<64x128xf32> to vector<64x128xbf16>
    %cst_66 = arith.constant dense<0.000000e+00> : vector<64x128xf32>
    %95 = tpu.matmul %93, %94, %cst_66 {dimension_numbers = #tpu.dot_dimension_numbers<[1], [0], [0], [1], [0, 0, 1, 1], [], []>} : vector<64x64xbf16>, vector<64x128xbf16>, vector<64x128xf32> -> vector<64x128xf32>
    %c8 = arith.constant 8 : index
    %c0_67 = arith.constant 0 : index
    %c0_68 = arith.constant 0 : index
    %96 = vector.load %arg4[%c8, %c0_67, %c0_68] : memref<11x64x1xf32, #tpu.memory_space<vmem>>, vector<1x64x1xf32>
    %97 = vector.shape_cast %96 : vector<1x64x1xf32> to vector<64x1xf32>
    %98 = vector.broadcast %97 : vector<64x1xf32> to vector<64x128xf32>
    %99 = arith.addf %95, %98 : vector<64x128xf32>
    %100 = arith.addf %99, %79 : vector<64x128xf32>
    %c8_69 = arith.constant 8 : index
    %c0_70 = arith.constant 0 : index
    %c0_71 = arith.constant 0 : index
    %101 = vector.load %arg3[%c8_69, %c0_70, %c0_71] : memref<10x64x64xbf16, #tpu.memory_space<vmem>>, vector<1x64x64xbf16>
    %102 = vector.shape_cast %101 : vector<1x64x64xbf16> to vector<64x64xbf16>
    %103 = arith.truncf %100 : vector<64x128xf32> to vector<64x128xbf16>
    %cst_72 = arith.constant dense<0.000000e+00> : vector<64x128xf32>
    %104 = tpu.matmul %102, %103, %cst_72 {dimension_numbers = #tpu.dot_dimension_numbers<[1], [0], [0], [1], [0, 0, 1, 1], [], []>} : vector<64x64xbf16>, vector<64x128xbf16>, vector<64x128xf32> -> vector<64x128xf32>
    %c9 = arith.constant 9 : index
    %c0_73 = arith.constant 0 : index
    %c0_74 = arith.constant 0 : index
    %105 = vector.load %arg4[%c9, %c0_73, %c0_74] : memref<11x64x1xf32, #tpu.memory_space<vmem>>, vector<1x64x1xf32>
    %106 = vector.shape_cast %105 : vector<1x64x1xf32> to vector<64x1xf32>
    %107 = vector.broadcast %106 : vector<64x1xf32> to vector<64x128xf32>
    %108 = arith.addf %104, %107 : vector<64x128xf32>
    %cst_75 = arith.constant 0.000000e+00 : f32
    %109 = vector.broadcast %cst_75 : f32 to vector<64x128xf32>
    %110 = arith.maximumf %108, %109 : vector<64x128xf32>
    %c9_76 = arith.constant 9 : index
    %c0_77 = arith.constant 0 : index
    %c0_78 = arith.constant 0 : index
    %111 = vector.load %arg3[%c9_76, %c0_77, %c0_78] : memref<10x64x64xbf16, #tpu.memory_space<vmem>>, vector<1x64x64xbf16>
    %112 = vector.shape_cast %111 : vector<1x64x64xbf16> to vector<64x64xbf16>
    %113 = arith.truncf %110 : vector<64x128xf32> to vector<64x128xbf16>
    %cst_79 = arith.constant dense<0.000000e+00> : vector<64x128xf32>
    %114 = tpu.matmul %112, %113, %cst_79 {dimension_numbers = #tpu.dot_dimension_numbers<[1], [0], [0], [1], [0, 0, 1, 1], [], []>} : vector<64x64xbf16>, vector<64x128xbf16>, vector<64x128xf32> -> vector<64x128xf32>
    %c10 = arith.constant 10 : index
    %c0_80 = arith.constant 0 : index
    %c0_81 = arith.constant 0 : index
    %115 = vector.load %arg4[%c10, %c0_80, %c0_81] : memref<11x64x1xf32, #tpu.memory_space<vmem>>, vector<1x64x1xf32>
    %116 = vector.shape_cast %115 : vector<1x64x1xf32> to vector<64x1xf32>
    %117 = vector.broadcast %116 : vector<64x1xf32> to vector<64x128xf32>
    %118 = arith.addf %114, %117 : vector<64x128xf32>
    %119 = vector.extract_strided_slice %118 {offsets = [0, 0], sizes = [48, 128], strides = [1, 1]} : vector<64x128xf32> to vector<48x128xf32>
    %c0_82 = arith.constant 0 : index
    %c0_83 = arith.constant 0 : index
    %120 = vector.load %arg7[%c0_82, %c0_83] : memref<48x128xf32, #tpu.memory_space<vmem>>, vector<48x128xf32>
    tpu.vector_store %arg7[%c0_82, %c0_83], %119 {strides = array<i32>} : memref<48x128xf32, #tpu.memory_space<vmem>>, vector<48x128xf32>,
    return
  }
  func.func @transform_0(%arg0: i32) -> (i32, i32) {
    %c0_i32 = arith.constant 0 : i32
    %c0_i32_0 = arith.constant 0 : i32
    return %c0_i32, %arg0 : i32, i32
  }
  func.func @transform_1(%arg0: i32) -> (i32, i32) {
    %c0_i32 = arith.constant 0 : i32
    %c0_i32_0 = arith.constant 0 : i32
    %c0_i32_1 = arith.constant 0 : i32
    return %c0_i32, %c0_i32_0 : i32, i32
  }
  func.func @transform_2(%arg0: i32) -> (i32, i32, i32) {
    %c0_i32 = arith.constant 0 : i32
    %c0_i32_0 = arith.constant 0 : i32
    %c0_i32_1 = arith.constant 0 : i32
    %c0_i32_2 = arith.constant 0 : i32
    return %c0_i32, %c0_i32_0, %c0_i32_1 : i32, i32, i32
  }
  func.func @transform_3(%arg0: i32) -> (i32, i32, i32) {
    %c0_i32 = arith.constant 0 : i32
    %c0_i32_0 = arith.constant 0 : i32
    %c0_i32_1 = arith.constant 0 : i32
    %c0_i32_2 = arith.constant 0 : i32
    return %c0_i32, %c0_i32_0, %c0_i32_1 : i32, i32, i32
  }
  func.func @transform_4(%arg0: i32) -> (i32, i32, i32) {
    %c0_i32 = arith.constant 0 : i32
    %c0_i32_0 = arith.constant 0 : i32
    %c0_i32_1 = arith.constant 0 : i32
    %c0_i32_2 = arith.constant 0 : i32
    return %c0_i32, %c0_i32_0, %c0_i32_1 : i32, i32, i32
  }
  func.func @transform_5(%arg0: i32) -> (i32, i32) {
    %c0_i32 = arith.constant 0 : i32
    %c0_i32_0 = arith.constant 0 : i32
    %c0_i32_1 = arith.constant 0 : i32
    return %c0_i32, %c0_i32_0 : i32, i32
  }
  func.func @transform_6(%arg0: i32) -> (i32, i32) {
    %c0_i32 = arith.constant 0 : i32
    %c0_i32_0 = arith.constant 0 : i32
    return %c0_i32, %arg0 : i32, i32
  }
}

</mosaic_0001>

<llo_original>
// kernel: causal_motion_forward.2
$region0: #{causal_motion_forward.2}
  #allocation0 [shape = 'u32[]', space=smem, size = 0x4, offset = 0x4, fixed_abs, tag = 'smem constant byte address 0x4 - core index']
  #allocation1 [shape = 'u32[144,128]{1,0:T(1,128)}', space=vmem, size = 0x12000, scoped, tag = 'internal scratch']
  %s0 = inlined_call_operand.vmem [shape: f32[40,128], index: 0, kind: input, shape index: {}]
  %s1 = inlined_call_operand.vmem [shape: bf16[64,40], index: 1, kind: input, shape index: {}]
  %s2 = inlined_call_operand.vmem [shape: bf16[3,64,64], index: 2, kind: input, shape index: {}]
  %s3 = inlined_call_operand.vmem [shape: f32[4,64,1], index: 3, kind: input, shape index: {}]
  %s4 = inlined_call_operand.vmem [shape: f32[8,128], index: 4, kind: output, shape index: {0}]
  %s5 = inlined_call_operand.vmem [shape: f32[1,8,128], index: 5, kind: output, shape index: {1}]
  %6 = xla_tuple %s4, %s5
  %s7 = sld [smem:[#allocation0]]
  $region34: #{causal_motion_forward.2} parent=0
    _
  %s9 = ssub.s32 1, %s7
  %s10 = scalar_select 0, %s9, %s7
  // Predicated region
  $region2: #{causal_motion_forward.2} parent=0 // pred_check
    _
  $region3: #{causal_motion_forward.2} parent=0 // pred_check_branch
    %12 = sbr.rel (0) target = $region5
  $region4: #{causal_motion_forward.2} parent=0 // pred_region
    _
  $region5: #{causal_motion_forward.2} parent=0 // pred_fallthru
    _
  // Predicated region
  $region6: #{causal_motion_forward.2} parent=0 // pred_check
    _
  $region7: #{causal_motion_forward.2} parent=0 // pred_check_branch
    %14 = sbr.rel (0) target = $region9
  $region8: #{causal_motion_forward.2} parent=0 // pred_region
    _
  $region9: #{causal_motion_forward.2} parent=0 // pred_fallthru
    _
  // Predicated region
  $region10: #{causal_motion_forward.2} parent=0 // pred_check
    _
  $region11: #{causal_motion_forward.2} parent=0 // pred_check_branch
    %16 = sbr.rel (0) target = $region13
  $region12: #{causal_motion_forward.2} parent=0 // pred_region
    _
  $region13: #{causal_motion_forward.2} parent=0 // pred_fallthru
    _
  // Predicated region
  $region14: #{causal_motion_forward.2} parent=0 // pred_check
    _
  $region15: #{causal_motion_forward.2} parent=0 // pred_check_branch
    %18 = sbr.rel (0) target = $region17
  $region16: #{causal_motion_forward.2} parent=0 // pred_region
    _
  $region17: #{causal_motion_forward.2} parent=0 // pred_fallthru
    _
  %v20 = vld [vmem:[%s0] sm:$0xff]
  %v21 = vld [vmem:[%s0 + $0x8] sm:$0xff]
  %v22 = vld [vmem:[%s0 + $0x10] sm:$0xff]
  %v23 = vld [vmem:[%s0 + $0x18] sm:$0xff]
  %v24 = vld [vmem:[%s0 + $0x20] sm:$0xff]
  %v25 = vld [vmem:[%s1] sm:$0xf]
  %v26 = vld [vmem:[%s1 + $0x4] sm:$0xf]
  %v27 = vld [vmem:[%s1 + $0x8] sm:$0xf]
  %v28 = vld [vmem:[%s1 + $0xc] sm:$0xf]
  %v29 = vld [vmem:[%s1 + $0x10] sm:$0xf]
  %v30 = vld [vmem:[%s1 + $0x14] sm:$0xf]
  %v31 = vld [vmem:[%s1 + $0x18] sm:$0xf]
  %v32 = vld [vmem:[%s1 + $0x1c] sm:$0xf]
  %v33 = vpack.c.bf16 %v21, %v20
  %v34 = vpack.c.bf16 %v23, %v22
  %v35 = vpack.c.bf16 %v24, %v24
  %v36 = vld [vmem:[%s3] sm:$0xff]
  %v37 = vld [vmem:[%s3 + $0x8] sm:$0xff]
  %v38 = vld [vmem:[%s3 + $0x10] sm:$0xff]
  %v39 = vld [vmem:[%s3 + $0x18] sm:$0xff]
  %v40 = vld [vmem:[%s3 + $0x20] sm:$0xff]
  %v41 = vld [vmem:[%s3 + $0x28] sm:$0xff]
  %v42 = vld [vmem:[%s3 + $0x30] sm:$0xff]
  %v43 = vld [vmem:[%s3 + $0x38] sm:$0xff]
  %45 = vset.pattern.permute.xlu0 0
  %46 = vperm.xlu0 %45, %v36
  %v47 = vpop.permute.xlu0 %46
  %50 = vset.pattern.permute.xlu0 0
  %51 = vperm.xlu0 %50, %v37
  %v52 = vpop.permute.xlu0 %51
  %55 = vset.pattern.permute.xlu0 0
  %56 = vperm.xlu0 %55, %v38
  %v57 = vpop.permute.xlu0 %56
  %60 = vset.pattern.permute.xlu0 0
  %61 = vperm.xlu0 %60, %v39
  %v62 = vpop.permute.xlu0 %61
  %65 = vset.pattern.permute.xlu0 0
  %66 = vperm.xlu0 %65, %v40
  %v67 = vpop.permute.xlu0 %66
  %70 = vset.pattern.permute.xlu0 0
  %71 = vperm.xlu0 %70, %v41
  %v72 = vpop.permute.xlu0 %71
  %75 = vset.pattern.permute.xlu0 0
  %76 = vperm.xlu0 %75, %v42
  %v77 = vpop.permute.xlu0 %76
  %80 = vset.pattern.permute.xlu0 0
  %81 = vperm.xlu0 %80, %v43
  %v82 = vpop.permute.xlu0 %81
  %v92 = vunpack.c.l.b16 %v25
  %v93 = vunpack.c.l.b16 %v26
  %v94 = vunpack.c.l.b16 %v27
  %v95 = vunpack.c.l.b16 %v28
  %v96 = vunpack.c.l.b16 %v29
  %v97 = vunpack.c.l.b16 %v30
  %v98 = vunpack.c.l.b16 %v31
  %v99 = vunpack.c.l.b16 %v32
  %v100 = vpack.c.b16 %v93, %v92
  %v101 = vpack.c.b16 %v95, %v94
  %v102 = vpack.c.b16 %v97, %v96
  %v103 = vpack.c.b16 %v99, %v98
  %vm104 = vcmask 326656
  %v106 = vsel %vm104, %v100, 0
  %v109 = vsel %vm104, %v101, 0
  %v112 = vsel %vm104, %v102, 0
  %v115 = vsel %vm104, %v103, 0
  %vm117 = vcmask 1043456
  %v119 = vsel %vm117, %v35, 0
  %121 = vmatprep.subr.bf16.mxu0 0
  %122 = vmatpush1.bf16.msra.mxu0 0
  %123 = vmatprep.subr.bf16.mxu0 0
  %124 = vmatpush1.bf16.msra.mxu0 0
  %125 = vmatprep.subr.bf16.mxu0 0
  %126 = vmatpush1.bf16.msra.mxu0 0
  %127 = vmatprep.subr.bf16.mxu0 0
  %128 = vmatpush1.bf16.msra.mxu0 0
  %129 = vmatprep.subr.bf16.mxu0 0
  %130 = vmatpush1.bf16.msra.mxu0 0
  %131 = vmatprep.subr.bf16.mxu0 0
  %132 = vmatpush1.bf16.msra.mxu0 %v119
  %133 = vmatprep.subr.bf16.mxu0 0
  %134 = vmatpush1.bf16.msra.mxu0 %v34
  %135 = vmatprep.subr.bf16.mxu0 0
  %136 = vmatpush1.bf16.msra.mxu0 %v33
  %137 = vmatprep.subr.bf16.mxu0 0
  %138 = vmatpush2.bf16.msra.mxu0 0
  %139 = vmatprep.subr.bf16.mxu0 0
  %140 = vmatpush2.bf16.msra.mxu0 0
  %141 = vmatprep.subr.bf16.mxu0 0
  %142 = vmatpush2.bf16.msra.mxu0 0
  %143 = vmatprep.subr.bf16.mxu0 0
  %144 = vmatpush2.bf16.msra.mxu0 0
  %145 = vmatprep.subr.bf16.mxu0 0
  %146 = vmatpush2.bf16.msra.mxu0 0
  %147 = vmatprep.subr.bf16.mxu0 0
  %148 = vmatpush2.bf16.msra.mxu0 0
  %149 = vmatprep.subr.bf16.mxu0 0
  %150 = vmatpush2.bf16.msra.mxu0 0
  %151 = vmatprep.subr.bf16.mxu0 0
  %152 = vmatpush2.bf16.msra.mxu0 0
  %153 = vmatprep.mubr.bf16.mxu0 0
  %154 = vmatmul.mubr.bf16.gmra.mxu0 %v106
  %v155 = vpop.f32.mrf.mxu0
  %v156 = vadd.f32 %v47, %v155
  %v157 = vpop.f32.mrf.mxu0
  %v158 = vpop.f32.mrf.mxu0
  %v159 = vadd.f32 %v52, %v158
  %v160 = vpop.f32.mrf.mxu0
  %161 = vmatprep.mubr.bf16.mxu0 0
  %162 = vmatmul.mubr.bf16.gmra.mxu0 %v109
  %v163 = vpop.f32.mrf.mxu0
  %v164 = vadd.f32 %v57, %v163
  %v165 = vpop.f32.mrf.mxu0
  %v166 = vpop.f32.mrf.mxu0
  %v167 = vadd.f32 %v62, %v166
  %v168 = vpop.f32.mrf.mxu0
  %169 = vmatprep.mubr.bf16.mxu0 0
  %170 = vmatmul.mubr.bf16.gmra.mxu0 %v112
  %v171 = vpop.f32.mrf.mxu0
  %v172 = vadd.f32 %v67, %v171
  %v173 = vpop.f32.mrf.mxu0
  %v174 = vpop.f32.mrf.mxu0
  %v175 = vadd.f32 %v72, %v174
  %v176 = vpop.f32.mrf.mxu0
  %177 = vmatprep.mubr.bf16.mxu0 0
  %178 = vmatmul.mubr.bf16.gmra.mxu0 %v115
  %v179 = vpop.f32.mrf.mxu0
  %v180 = vadd.f32 %v77, %v179
  %v181 = vpop.f32.mrf.mxu0
  %v182 = vpop.f32.mrf.mxu0
  %v183 = vadd.f32 %v82, %v182
  %v184 = vpop.f32.mrf.mxu0
  %185 = vdwg.mxu0
  %v186 = vmax.f32 %v156, 0.0
  %v187 = vmax.f32 %v159, 0.0
  %v188 = vmax.f32 %v164, 0.0
  %v189 = vmax.f32 %v167, 0.0
  %v190 = vmax.f32 %v172, 0.0
  %v191 = vmax.f32 %v175, 0.0
  %v192 = vmax.f32 %v180, 0.0
  %v193 = vmax.f32 %v183, 0.0
  %v194 = vld [vmem:[%s2] sm:$0xf]
  %v195 = vld [vmem:[%s2 + $0x4] sm:$0xf]
  %v196 = vld [vmem:[%s2 + $0x8] sm:$0xf]
  %v197 = vld [vmem:[%s2 + $0xc] sm:$0xf]
  %v198 = vld [vmem:[%s2 + $0x10] sm:$0xf]
  %v199 = vld [vmem:[%s2 + $0x14] sm:$0xf]
  %v200 = vld [vmem:[%s2 + $0x18] sm:$0xf]
  %v201 = vld [vmem:[%s2 + $0x1c] sm:$0xf]
  %v202 = vpack.c.bf16 %v187, %v186
  %v203 = vpack.c.bf16 %v189, %v188
  %v204 = vpack.c.bf16 %v191, %v190
  %v205 = vpack.c.bf16 %v193, %v192
  %s206 = scalar_lea.vmem %s3, 64
  %v207 = vld [vmem:[%s206] sm:$0xff]
  %v208 = vld [vmem:[%s206 + $0x8] sm:$0xff]
  %v209 = vld [vmem:[%s206 + $0x10] sm:$0xff]
  %v210 = vld [vmem:[%s206 + $0x18] sm:$0xff]
  %v211 = vld [vmem:[%s206 + $0x20] sm:$0xff]
  %v212 = vld [vmem:[%s206 + $0x28] sm:$0xff]
  %v213 = vld [vmem:[%s206 + $0x30] sm:$0xff]
  %v214 = vld [vmem:[%s206 + $0x38] sm:$0xff]
  %216 = vset.pattern.permute.xlu0 0
  %217 = vperm.xlu0 %216, %v207
  %v218 = vpop.permute.xlu0 %217
  %221 = vset.pattern.permute.xlu0 0
  %222 = vperm.xlu0 %221, %v208
  %v223 = vpop.permute.xlu0 %222
  %226 = vset.pattern.permute.xlu0 0
  %227 = vperm.xlu0 %226, %v209
  %v228 = vpop.permute.xlu0 %227
  %231 = vset.pattern.permute.xlu0 0
  %232 = vperm.xlu0 %231, %v210
  %v233 = vpop.permute.xlu0 %232
  %236 = vset.pattern.permute.xlu0 0
  %237 = vperm.xlu0 %236, %v211
  %v238 = vpop.permute.xlu0 %237
  %241 = vset.pattern.permute.xlu0 0
  %242 = vperm.xlu0 %241, %v212
  %v243 = vpop.permute.xlu0 %242
  %246 = vset.pattern.permute.xlu0 0
  %247 = vperm.xlu0 %246, %v213
  %v248 = vpop.permute.xlu0 %247
  %251 = vset.pattern.permute.xlu0 0
  %252 = vperm.xlu0 %251, %v214
  %v253 = vpop.permute.xlu0 %252
  %v263 = vunpack.c.l.b16 %v194
  %v264 = vunpack.c.l.b16 %v195
  %v265 = vunpack.c.l.b16 %v196
  %v266 = vunpack.c.l.b16 %v197
  %v267 = vunpack.c.l.b16 %v198
  %v268 = vunpack.c.l.b16 %v199
  %v269 = vunpack.c.l.b16 %v200
  %v270 = vunpack.c.l.b16 %v201
  %v271 = vpack.c.b16 %v264, %v263
  %v272 = vpack.c.b16 %v266, %v265
  %v273 = vpack.c.b16 %v268, %v267
  %v274 = vpack.c.b16 %v270, %v269
  %vm275 = vcmask 523264
  %v277 = vsel %vm275, %v271, 0
  %v280 = vsel %vm275, %v272, 0
  %v283 = vsel %vm275, %v273, 0
  %v286 = vsel %vm275, %v274, 0
  %288 = vmatprep.subr.bf16.mxu0 0
  %289 = vmatpush1.bf16.msra.mxu0 0
  %290 = vmatprep.subr.bf16.mxu0 0
  %291 = vmatpush1.bf16.msra.mxu0 0
  %292 = vmatprep.subr.bf16.mxu0 0
  %293 = vmatpush1.bf16.msra.mxu0 0
  %294 = vmatprep.subr.bf16.mxu0 0
  %295 = vmatpush1.bf16.msra.mxu0 0
  %296 = vmatprep.subr.bf16.mxu0 0
  %297 = vmatpush1.bf16.msra.mxu0 %v205
  %298 = vmatprep.subr.bf16.mxu0 0
  %299 = vmatpush1.bf16.msra.mxu0 %v204
  %300 = vmatprep.subr.bf16.mxu0 0
  %301 = vmatpush1.bf16.msra.mxu0 %v203
  %302 = vmatprep.subr.bf16.mxu0 0
  %303 = vmatpush1.bf16.msra.mxu0 %v202
  %304 = vmatprep.subr.bf16.mxu0 0
  %305 = vmatpush2.bf16.msra.mxu0 0
  %306 = vmatprep.subr.bf16.mxu0 0
  %307 = vmatpush2.bf16.msra.mxu0 0
  %308 = vmatprep.subr.bf16.mxu0 0
  %309 = vmatpush2.bf16.msra.mxu0 0
  %310 = vmatprep.subr.bf16.mxu0 0
  %311 = vmatpush2.bf16.msra.mxu0 0
  %312 = vmatprep.subr.bf16.mxu0 0
  %313 = vmatpush2.bf16.msra.mxu0 0
  %314 = vmatprep.subr.bf16.mxu0 0
  %315 = vmatpush2.bf16.msra.mxu0 0
  %316 = vmatprep.subr.bf16.mxu0 0
  %317 = vmatpush2.bf16.msra.mxu0 0
  %318 = vmatprep.subr.bf16.mxu0 0
  %319 = vmatpush2.bf16.msra.mxu0 0
  %320 = vmatprep.mubr.bf16.mxu0 0
  %321 = vmatmul.mubr.bf16.gmra.mxu0 %v277
  %v322 = vpop.f32.mrf.mxu0
  %v323 = vadd.f32 %v218, %v322
  %v324 = vpop.f32.mrf.mxu0
  %v325 = vpop.f32.mrf.mxu0
  %v326 = vadd.f32 %v223, %v325
  %v327 = vpop.f32.mrf.mxu0
  %328 = vmatprep.mubr.bf16.mxu0 0
  %329 = vmatmul.mubr.bf16.gmra.mxu0 %v280
  %v330 = vpop.f32.mrf.mxu0
  %v331 = vadd.f32 %v228, %v330
  %v332 = vpop.f32.mrf.mxu0
  %v333 = vpop.f32.mrf.mxu0
  %v334 = vadd.f32 %v233, %v333
  %v335 = vpop.f32.mrf.mxu0
  %336 = vmatprep.mubr.bf16.mxu0 0
  %337 = vmatmul.mubr.bf16.gmra.mxu0 %v283
  %v338 = vpop.f32.mrf.mxu0
  %v339 = vadd.f32 %v238, %v338
  %v340 = vpop.f32.mrf.mxu0
  %v341 = vpop.f32.mrf.mxu0
  %v342 = vadd.f32 %v243, %v341
  %v343 = vpop.f32.mrf.mxu0
  %344 = vmatprep.mubr.bf16.mxu0 0
  %345 = vmatmul.mubr.bf16.gmra.mxu0 %v286
  %v346 = vpop.f32.mrf.mxu0
  %v347 = vadd.f32 %v248, %v346
  %v348 = vpop.f32.mrf.mxu0
  %v349 = vpop.f32.mrf.mxu0
  %v350 = vadd.f32 %v253, %v349
  %v351 = vpop.f32.mrf.mxu0
  %352 = vdwg.mxu0
  %v353 = vlaneseq
  %v354 = vand.u32 %v353, 127
  %s355 = smul.u32 0, 128
  %v356 = vstv %s355
  %v357 = vadd.s32 %v354, %v356
  %vm358 = vcmp.lt.s32.totalorder %v357, 4
  %v359 = vsel %vm358, %v323, 0.0
  %360 = vadd.xlane.f32.xlu0 %v359
  %v361 = vpop.xlane.xlu0 %360
  %362 = vst [vmem:[%s5] sm:$0xff] %v361
  %s363 = scalar_lea.vmem %s2, 64
  %v364 = vld [vmem:[%s363] sm:$0xf]
  %v365 = vld [vmem:[%s363 + $0x4] sm:$0xf]
  %v366 = vld [vmem:[%s363 + $0x8] sm:$0xf]
  %v367 = vld [vmem:[%s363 + $0xc] sm:$0xf]
  %v368 = vld [vmem:[%s363 + $0x10] sm:$0xf]
  %v369 = vld [vmem:[%s363 + $0x14] sm:$0xf]
  %v370 = vld [vmem:[%s363 + $0x18] sm:$0xf]
  %v371 = vld [vmem:[%s363 + $0x1c] sm:$0xf]
  %s372 = scalar_lea.vmem %s2, 32
  %v373 = vld [vmem:[%s372] sm:$0xf]
  %v374 = vld [vmem:[%s372 + $0x4] sm:$0xf]
  %v375 = vld [vmem:[%s372 + $0x8] sm:$0xf]
  %v376 = vld [vmem:[%s372 + $0xc] sm:$0xf]
  %v377 = vld [vmem:[%s372 + $0x10] sm:$0xf]
  %v378 = vld [vmem:[%s372 + $0x14] sm:$0xf]
  %v379 = vld [vmem:[%s372 + $0x18] sm:$0xf]
  %v380 = vld [vmem:[%s372 + $0x1c] sm:$0xf]
  %v381 = vpack.c.bf16 %v326, %v323
  %v382 = vpack.c.bf16 %v334, %v331
  %v383 = vpack.c.bf16 %v342, %v339
  %v384 = vpack.c.bf16 %v350, %v347
  %s385 = scalar_lea.vmem %s3, 128
  %v386 = vld [vmem:[%s385] sm:$0xff]
  %v387 = vld [vmem:[%s385 + $0x8] sm:$0xff]
  %v388 = vld [vmem:[%s385 + $0x10] sm:$0xff]
  %v389 = vld [vmem:[%s385 + $0x18] sm:$0xff]
  %v390 = vld [vmem:[%s385 + $0x20] sm:$0xff]
  %v391 = vld [vmem:[%s385 + $0x28] sm:$0xff]
  %v392 = vld [vmem:[%s385 + $0x30] sm:$0xff]
  %v393 = vld [vmem:[%s385 + $0x38] sm:$0xff]
  %395 = vset.pattern.permute.xlu0 0
  %396 = vperm.xlu0 %395, %v386
  %v397 = vpop.permute.xlu0 %396
  %400 = vset.pattern.permute.xlu0 0
  %401 = vperm.xlu0 %400, %v387
  %v402 = vpop.permute.xlu0 %401
  %405 = vset.pattern.permute.xlu0 0
  %406 = vperm.xlu0 %405, %v388
  %v407 = vpop.permute.xlu0 %406
  %410 = vset.pattern.permute.xlu0 0
  %411 = vperm.xlu0 %410, %v389
  %v412 = vpop.permute.xlu0 %411
  %415 = vset.pattern.permute.xlu0 0
  %416 = vperm.xlu0 %415, %v390
  %v417 = vpop.permute.xlu0 %416
  %420 = vset.pattern.permute.xlu0 0
  %421 = vperm.xlu0 %420, %v391
  %v422 = vpop.permute.xlu0 %421
  %425 = vset.pattern.permute.xlu0 0
  %426 = vperm.xlu0 %425, %v392
  %v427 = vpop.permute.xlu0 %426
  %430 = vset.pattern.permute.xlu0 0
  %431 = vperm.xlu0 %430, %v393
  %v432 = vpop.permute.xlu0 %431
  %v442 = vunpack.c.l.b16 %v373
  %v443 = vunpack.c.l.b16 %v374
  %v444 = vunpack.c.l.b16 %v375
  %v445 = vunpack.c.l.b16 %v376
  %v446 = vunpack.c.l.b16 %v377
  %v447 = vunpack.c.l.b16 %v378
  %v448 = vunpack.c.l.b16 %v379
  %v449 = vunpack.c.l.b16 %v380
  %v450 = vpack.c.b16 %v443, %v442
  %v451 = vpack.c.b16 %v445, %v444
  %v452 = vpack.c.b16 %v447, %v446
  %v453 = vpack.c.b16 %v449, %v448
  %v455 = vsel %vm275, %v450, 0
  %v458 = vsel %vm275, %v451, 0
  %v461 = vsel %vm275, %v452, 0
  %v464 = vsel %vm275, %v453, 0
  %466 = vmatprep.subr.bf16.mxu0 0
  %467 = vmatpush1.bf16.msra.mxu0 0
  %468 = vmatprep.subr.bf16.mxu0 0
  %469 = vmatpush1.bf16.msra.mxu0 0
  %470 = vmatprep.subr.bf16.mxu0 0
  %471 = vmatpush1.bf16.msra.mxu0 0
  %472 = vmatprep.subr.bf16.mxu0 0
  %473 = vmatpush1.bf16.msra.mxu0 0
  %474 = vmatprep.subr.bf16.mxu0 0
  %475 = vmatpush1.bf16.msra.mxu0 %v384
  %476 = vmatprep.subr.bf16.mxu0 0
  %477 = vmatpush1.bf16.msra.mxu0 %v383
  %478 = vmatprep.subr.bf16.mxu0 0
  %479 = vmatpush1.bf16.msra.mxu0 %v382
  %480 = vmatprep.subr.bf16.mxu0 0
  %481 = vmatpush1.bf16.msra.mxu0 %v381
  %482 = vmatprep.subr.bf16.mxu0 0
  %483 = vmatpush2.bf16.msra.mxu0 0
  %484 = vmatprep.subr.bf16.mxu0 0
  %485 = vmatpush2.bf16.msra.mxu0 0
  %486 = vmatprep.subr.bf16.mxu0 0
  %487 = vmatpush2.bf16.msra.mxu0 0
  %488 = vmatprep.subr.bf16.mxu0 0
  %489 = vmatpush2.bf16.msra.mxu0 0
  %490 = vmatprep.subr.bf16.mxu0 0
  %491 = vmatpush2.bf16.msra.mxu0 0
  %492 = vmatprep.subr.bf16.mxu0 0
  %493 = vmatpush2.bf16.msra.mxu0 0
  %494 = vmatprep.subr.bf16.mxu0 0
  %495 = vmatpush2.bf16.msra.mxu0 0
  %496 = vmatprep.subr.bf16.mxu0 0
  %497 = vmatpush2.bf16.msra.mxu0 0
  %498 = vmatprep.mubr.bf16.mxu0 0
  %499 = vmatmul.mubr.bf16.gmra.mxu0 %v455
  %v500 = vpop.f32.mrf.mxu0
  %v501 = vadd.f32 %v397, %v500
  %v502 = vpop.f32.mrf.mxu0
  %v503 = vpop.f32.mrf.mxu0
  %v504 = vadd.f32 %v402, %v503
  %v505 = vpop.f32.mrf.mxu0
  %506 = vmatprep.mubr.bf16.mxu0 0
  %507 = vmatmul.mubr.bf16.gmra.mxu0 %v458
  %v508 = vpop.f32.mrf.mxu0
  %v509 = vadd.f32 %v407, %v508
  %v510 = vpop.f32.mrf.mxu0
  %v511 = vpop.f32.mrf.mxu0
  %v512 = vadd.f32 %v412, %v511
  %v513 = vpop.f32.mrf.mxu0
  %514 = vmatprep.mubr.bf16.mxu0 0
  %515 = vmatmul.mubr.bf16.gmra.mxu0 %v461
  %v516 = vpop.f32.mrf.mxu0
  %v517 = vadd.f32 %v417, %v516
  %v518 = vpop.f32.mrf.mxu0
  %v519 = vpop.f32.mrf.mxu0
  %v520 = vadd.f32 %v422, %v519
  %v521 = vpop.f32.mrf.mxu0
  %522 = vmatprep.mubr.bf16.mxu0 0
  %523 = vmatmul.mubr.bf16.gmra.mxu0 %v464
  %v524 = vpop.f32.mrf.mxu0
  %v525 = vadd.f32 %v427, %v524
  %v526 = vpop.f32.mrf.mxu0
  %v527 = vpop.f32.mrf.mxu0
  %v528 = vadd.f32 %v432, %v527
  %v529 = vpop.f32.mrf.mxu0
  %530 = vdwg.mxu0
  %v531 = vmax.f32 %v501, 0.0
  %v532 = vmax.f32 %v504, 0.0
  %v533 = vmax.f32 %v509, 0.0
  %v534 = vmax.f32 %v512, 0.0
  %v535 = vmax.f32 %v517, 0.0
  %v536 = vmax.f32 %v520, 0.0
  %v537 = vmax.f32 %v525, 0.0
  %v538 = vmax.f32 %v528, 0.0
  %v539 = vpack.c.bf16 %v532, %v531
  %v540 = vpack.c.bf16 %v534, %v533
  %v541 = vpack.c.bf16 %v536, %v535
  %v542 = vpack.c.bf16 %v538, %v537
  %s543 = scalar_lea.vmem %s3, 192
  %v544 = vld [vmem:[%s543] sm:$0xff]
  %v545 = vld [vmem:[%s543 + $0x8] sm:$0xff]
  %v546 = vld [vmem:[%s543 + $0x10] sm:$0xff]
  %v547 = vld [vmem:[%s543 + $0x18] sm:$0xff]
  %v548 = vld [vmem:[%s543 + $0x20] sm:$0xff]
  %v549 = vld [vmem:[%s543 + $0x28] sm:$0xff]
  %v550 = vld [vmem:[%s543 + $0x30] sm:$0xff]
  %v551 = vld [vmem:[%s543 + $0x38] sm:$0xff]
  %553 = vset.pattern.permute.xlu0 0
  %554 = vperm.xlu0 %553, %v544
  %v555 = vpop.permute.xlu0 %554
  %558 = vset.pattern.permute.xlu0 0
  %559 = vperm.xlu0 %558, %v545
  %v560 = vpop.permute.xlu0 %559
  %562 = vset.pattern.permute.xlu0 0
  %563 = vperm.xlu0 %562, %v546
  %v564 = vpop.permute.xlu0 %563
  %566 = vset.pattern.permute.xlu0 0
  %567 = vperm.xlu0 %566, %v547
  %v568 = vpop.permute.xlu0 %567
  %570 = vset.pattern.permute.xlu0 0
  %571 = vperm.xlu0 %570, %v548
  %v572 = vpop.permute.xlu0 %571
  %574 = vset.pattern.permute.xlu0 0
  %575 = vperm.xlu0 %574, %v549
  %v576 = vpop.permute.xlu0 %575
  %578 = vset.pattern.permute.xlu0 0
  %579 = vperm.xlu0 %578, %v550
  %v580 = vpop.permute.xlu0 %579
  %582 = vset.pattern.permute.xlu0 0
  %583 = vperm.xlu0 %582, %v551
  %v584 = vpop.permute.xlu0 %583
  %v593 = vunpack.c.l.b16 %v364
  %v594 = vunpack.c.l.b16 %v365
  %v595 = vunpack.c.l.b16 %v366
  %v596 = vunpack.c.l.b16 %v367
  %v597 = vunpack.c.l.b16 %v368
  %v598 = vunpack.c.l.b16 %v369
  %v599 = vunpack.c.l.b16 %v370
  %v600 = vunpack.c.l.b16 %v371
  %v601 = vpack.c.b16 %v594, %v593
  %v602 = vpack.c.b16 %v596, %v595
  %v603 = vpack.c.b16 %v598, %v597
  %v604 = vpack.c.b16 %v600, %v599
  %v606 = vsel %vm275, %v601, 0
  %v609 = vsel %vm275, %v602, 0
  %v612 = vsel %vm275, %v603, 0
  %v615 = vsel %vm275, %v604, 0
  %617 = vmatprep.subr.bf16.mxu0 0
  %618 = vmatpush1.bf16.msra.mxu0 0
  %619 = vmatprep.subr.bf16.mxu0 0
  %620 = vmatpush1.bf16.msra.mxu0 0
  %621 = vmatprep.subr.bf16.mxu0 0
  %622 = vmatpush1.bf16.msra.mxu0 0
  %623 = vmatprep.subr.bf16.mxu0 0
  %624 = vmatpush1.bf16.msra.mxu0 0
  %625 = vmatprep.subr.bf16.mxu0 0
  %626 = vmatpush1.bf16.msra.mxu0 %v542
  %627 = vmatprep.subr.bf16.mxu0 0
  %628 = vmatpush1.bf16.msra.mxu0 %v541
  %629 = vmatprep.subr.bf16.mxu0 0
  %630 = vmatpush1.bf16.msra.mxu0 %v540
  %631 = vmatprep.subr.bf16.mxu0 0
  %632 = vmatpush1.bf16.msra.mxu0 %v539
  %633 = vmatprep.subr.bf16.mxu0 0
  %634 = vmatpush2.bf16.msra.mxu0 0
  %635 = vmatprep.subr.bf16.mxu0 0
  %636 = vmatpush2.bf16.msra.mxu0 0
  %637 = vmatprep.subr.bf16.mxu0 0
  %638 = vmatpush2.bf16.msra.mxu0 0
  %639 = vmatprep.subr.bf16.mxu0 0
  %640 = vmatpush2.bf16.msra.mxu0 0
  %641 = vmatprep.subr.bf16.mxu0 0
  %642 = vmatpush2.bf16.msra.mxu0 0
  %643 = vmatprep.subr.bf16.mxu0 0
  %644 = vmatpush2.bf16.msra.mxu0 0
  %645 = vmatprep.subr.bf16.mxu0 0
  %646 = vmatpush2.bf16.msra.mxu0 0
  %647 = vmatprep.subr.bf16.mxu0 0
  %648 = vmatpush2.bf16.msra.mxu0 0
  %649 = vmatprep.mubr.bf16.mxu0 0
  %650 = vmatmul.mubr.bf16.gmra.mxu0 %v606
  %v651 = vpop.f32.mrf.mxu0
  %v652 = vadd.f32 %v555, %v651
  %v653 = vpop.f32.mrf.mxu0
  %v654 = vpop.f32.mrf.mxu0
  %v655 = vpop.f32.mrf.mxu0
  %656 = vmatprep.mubr.bf16.mxu0 0
  %657 = vmatmul.mubr.bf16.gmra.mxu0 %v609
  %v658 = vpop.f32.mrf.mxu0
  %v659 = vpop.f32.mrf.mxu0
  %v660 = vpop.f32.mrf.mxu0
  %v661 = vpop.f32.mrf.mxu0
  %662 = vmatprep.mubr.bf16.mxu0 0
  %663 = vmatmul.mubr.bf16.gmra.mxu0 %v612
  %v664 = vpop.f32.mrf.mxu0
  %v665 = vpop.f32.mrf.mxu0
  %v666 = vpop.f32.mrf.mxu0
  %v667 = vpop.f32.mrf.mxu0
  %668 = vmatprep.mubr.bf16.mxu0 0
  %669 = vmatmul.mubr.bf16.gmra.mxu0 %v615
  %v670 = vpop.f32.mrf.mxu0
  %v671 = vpop.f32.mrf.mxu0
  %v672 = vpop.f32.mrf.mxu0
  %v673 = vpop.f32.mrf.mxu0
  %674 = vdwg.mxu0
  %v675 = vmul.f32 %v652, %v652
  %v676 = vrot.slane %v675, 4
  %v677 = vadd.f32 %v675, %v676
  %v678 = vrot.slane %v677, 2
  %v679 = vadd.f32 %v677, %v678
  %v680 = vrot.slane %v679, 1
  %v681 = vadd.f32 %v679, %v680
  %v682 = vmax.f32 %v681, 1e-24
  %v683 = vrsqrt.pop %v682
  %v684 = vmul.f32 %v652, %v683
  %685 = vst [vmem:[%s4] sm:$0xff] %v684
  // Predicated region
  $region18: #{causal_motion_forward.2} parent=0 // pred_check
    _
  $region19: #{causal_motion_forward.2} parent=0 // pred_check_branch
    %687 = sbr.rel (0) target = $region21
  $region20: #{causal_motion_forward.2} parent=0 // pred_region
    _
  $region21: #{causal_motion_forward.2} parent=0 // pred_fallthru
    _
  // Predicated region
  $region22: #{causal_motion_forward.2} parent=0 // pred_check
    _
  $region23: #{causal_motion_forward.2} parent=0 // pred_check_branch
    %689 = sbr.rel (0) target = $region25
  $region24: #{causal_motion_forward.2} parent=0 // pred_region
    _
  $region25: #{causal_motion_forward.2} parent=0 // pred_fallthru
    _
  // Predicated region
  $region26: #{causal_motion_forward.2} parent=0 // pred_check
    _
  $region27: #{causal_motion_forward.2} parent=0 // pred_check_branch
    %691 = sbr.rel (0) target = $region29
  $region28: #{causal_motion_forward.2} parent=0 // pred_region
    _
  $region29: #{causal_motion_forward.2} parent=0 // pred_fallthru
    _
  // Predicated region
  $region30: #{causal_motion_forward.2} parent=0 // pred_check
    _
  $region31: #{causal_motion_forward.2} parent=0 // pred_check_branch
    %693 = sbr.rel (0) target = $region33
  $region32: #{causal_motion_forward.2} parent=0 // pred_region
    _
  $region33: #{causal_motion_forward.2} parent=0 // pred_fallthru
    _

// kernel: causal_motion_forward.3
$region0: #{causal_motion_forward.3}
  #allocation0 [shape = 'u32[]', space=smem, size = 0x4, offset = 0x4, fixed_abs, tag = 'smem constant byte address 0x4 - core index']
  #allocation1 [shape = 'u32[144,128]{1,0:T(1,128)}', space=vmem, size = 0x12000, scoped, tag = 'internal scratch']
  %s0 = inlined_call_operand.vmem [shape: f32[32,128], index: 0, kind: input, shape index: {}]
  %s1 = inlined_call_operand.vmem [shape: bf16[64,32], index: 1, kind: input, shape index: {}]
  %s2 = inlined_call_operand.vmem [shape: bf16[10,64,64], index: 2, kind: input, shape index: {}]
  %s3 = inlined_call_operand.vmem [shape: f32[11,64,1], index: 3, kind: input, shape index: {}]
  %s4 = inlined_call_operand.vmem [shape: f32[2,64,8], index: 4, kind: input, shape index: {}]
  %s5 = inlined_call_operand.vmem [shape: f32[1,8], index: 5, kind: input, shape index: {}]
  %s6 = inlined_call_operand.vmem [shape: f32[48,128], index: 6, kind: output, shape index: {}]
  %s7 = sld [smem:[#allocation0]]
  $region34: #{causal_motion_forward.3} parent=0
    _
  %s9 = ssub.s32 1, %s7
  %s10 = scalar_select 0, %s9, %s7
  // Predicated region
  $region2: #{causal_motion_forward.3} parent=0 // pred_check
    _
  $region3: #{causal_motion_forward.3} parent=0 // pred_check_branch
    %12 = sbr.rel (0) target = $region5
  $region4: #{causal_motion_forward.3} parent=0 // pred_region
    _
  $region5: #{causal_motion_forward.3} parent=0 // pred_fallthru
    _
  // Predicated region
  $region6: #{causal_motion_forward.3} parent=0 // pred_check
    _
  $region7: #{causal_motion_forward.3} parent=0 // pred_check_branch
    %14 = sbr.rel (0) target = $region9
  $region8: #{causal_motion_forward.3} parent=0 // pred_region
    _
  $region9: #{causal_motion_forward.3} parent=0 // pred_fallthru
    _
  // Predicated region
  $region10: #{causal_motion_forward.3} parent=0 // pred_check
    _
  $region11: #{causal_motion_forward.3} parent=0 // pred_check_branch
    %16 = sbr.rel (0) target = $region13
  $region12: #{causal_motion_forward.3} parent=0 // pred_region
    _
  $region13: #{causal_motion_forward.3} parent=0 // pred_fallthru
    _
  // Predicated region
  $region14: #{causal_motion_forward.3} parent=0 // pred_check
    _
  $region15: #{causal_motion_forward.3} parent=0 // pred_check_branch
    %18 = sbr.rel (0) target = $region17
  $region16: #{causal_motion_forward.3} parent=0 // pred_region
    _
  $region17: #{causal_motion_forward.3} parent=0 // pred_fallthru
    _
  // Predicated region
  $region18: #{causal_motion_forward.3} parent=0 // pred_check
    _
  $region19: #{causal_motion_forward.3} parent=0 // pred_check_branch
    %20 = sbr.rel (0) target = $region21
  $region20: #{causal_motion_forward.3} parent=0 // pred_region
    _
  $region21: #{causal_motion_forward.3} parent=0 // pred_fallthru
    _
  // Predicated region
  $region22: #{causal_motion_forward.3} parent=0 // pred_check
    _
  $region23: #{causal_motion_forward.3} parent=0 // pred_check_branch
    %22 = sbr.rel (0) target = $region25
  $region24: #{causal_motion_forward.3} parent=0 // pred_region
    _
  $region25: #{causal_motion_forward.3} parent=0 // pred_fallthru
    _
  %v24 = vld [vmem:[%s0] sm:$0xff]
  %v25 = vld [vmem:[%s0 + $0x8] sm:$0xff]
  %v26 = vld [vmem:[%s0 + $0x10] sm:$0xff]
  %v27 = vld [vmem:[%s0 + $0x18] sm:$0xff]
  %v28 = vld [vmem:[%s1] sm:$0xf]
  %v29 = vld [vmem:[%s1 + $0x4] sm:$0xf]
  %v30 = vld [vmem:[%s1 + $0x8] sm:$0xf]
  %v31 = vld [vmem:[%s1 + $0xc] sm:$0xf]
  %v32 = vld [vmem:[%s1 + $0x10] sm:$0xf]
  %v33 = vld [vmem:[%s1 + $0x14] sm:$0xf]
  %v34 = vld [vmem:[%s1 + $0x18] sm:$0xf]
  %v35 = vld [vmem:[%s1 + $0x1c] sm:$0xf]
  %v36 = vpack.c.bf16 %v25, %v24
  %v37 = vpack.c.bf16 %v27, %v26
  %v38 = vld [vmem:[%s3] sm:$0xff]
  %v39 = vld [vmem:[%s3 + $0x8] sm:$0xff]
  %v40 = vld [vmem:[%s3 + $0x10] sm:$0xff]
  %v41 = vld [vmem:[%s3 + $0x18] sm:$0xff]
  %v42 = vld [vmem:[%s3 + $0x20] sm:$0xff]
  %v43 = vld [vmem:[%s3 + $0x28] sm:$0xff]
  %v44 = vld [vmem:[%s3 + $0x30] sm:$0xff]
  %v45 = vld [vmem:[%s3 + $0x38] sm:$0xff]
  %47 = vset.pattern.permute.xlu0 0
  %48 = vperm.xlu0 %47, %v38
  %v49 = vpop.permute.xlu0 %48
  %52 = vset.pattern.permute.xlu0 0
  %53 = vperm.xlu0 %52, %v39
  %v54 = vpop.permute.xlu0 %53
  %57 = vset.pattern.permute.xlu0 0
  %58 = vperm.xlu0 %57, %v40
  %v59 = vpop.permute.xlu0 %58
  %62 = vset.pattern.permute.xlu0 0
  %63 = vperm.xlu0 %62, %v41
  %v64 = vpop.permute.xlu0 %63
  %67 = vset.pattern.permute.xlu0 0
  %68 = vperm.xlu0 %67, %v42
  %v69 = vpop.permute.xlu0 %68
  %72 = vset.pattern.permute.xlu0 0
  %73 = vperm.xlu0 %72, %v43
  %v74 = vpop.permute.xlu0 %73
  %77 = vset.pattern.permute.xlu0 0
  %78 = vperm.xlu0 %77, %v44
  %v79 = vpop.permute.xlu0 %78
  %82 = vset.pattern.permute.xlu0 0
  %83 = vperm.xlu0 %82, %v45
  %v84 = vpop.permute.xlu0 %83
  %v94 = vunpack.c.l.b16 %v28
  %v95 = vunpack.c.l.b16 %v29
  %v96 = vunpack.c.l.b16 %v30
  %v97 = vunpack.c.l.b16 %v31
  %v98 = vunpack.c.l.b16 %v32
  %v99 = vunpack.c.l.b16 %v33
  %v100 = vunpack.c.l.b16 %v34
  %v101 = vunpack.c.l.b16 %v35
  %v102 = vpack.c.b16 %v95, %v94
  %v103 = vpack.c.b16 %v97, %v96
  %v104 = vpack.c.b16 %v99, %v98
  %v105 = vpack.c.b16 %v101, %v100
  %vm106 = vcmask 261120
  %v108 = vsel %vm106, %v102, 0
  %v111 = vsel %vm106, %v103, 0
  %v114 = vsel %vm106, %v104, 0
  %v117 = vsel %vm106, %v105, 0
  %119 = vmatprep.subr.bf16.mxu0 0
  %120 = vmatpush1.bf16.msra.mxu0 0
  %121 = vmatprep.subr.bf16.mxu0 0
  %122 = vmatpush1.bf16.msra.mxu0 0
  %123 = vmatprep.subr.bf16.mxu0 0
  %124 = vmatpush1.bf16.msra.mxu0 0
  %125 = vmatprep.subr.bf16.mxu0 0
  %126 = vmatpush1.bf16.msra.mxu0 0
  %127 = vmatprep.subr.bf16.mxu0 0
  %128 = vmatpush1.bf16.msra.mxu0 0
  %129 = vmatprep.subr.bf16.mxu0 0
  %130 = vmatpush1.bf16.msra.mxu0 0
  %131 = vmatprep.subr.bf16.mxu0 0
  %132 = vmatpush1.bf16.msra.mxu0 %v37
  %133 = vmatprep.subr.bf16.mxu0 0
  %134 = vmatpush1.bf16.msra.mxu0 %v36
  %135 = vmatprep.subr.bf16.mxu0 0
  %136 = vmatpush2.bf16.msra.mxu0 0
  %137 = vmatprep.subr.bf16.mxu0 0
  %138 = vmatpush2.bf16.msra.mxu0 0
  %139 = vmatprep.subr.bf16.mxu0 0
  %140 = vmatpush2.bf16.msra.mxu0 0
  %141 = vmatprep.subr.bf16.mxu0 0
  %142 = vmatpush2.bf16.msra.mxu0 0
  %143 = vmatprep.subr.bf16.mxu0 0
  %144 = vmatpush2.bf16.msra.mxu0 0
  %145 = vmatprep.subr.bf16.mxu0 0
  %146 = vmatpush2.bf16.msra.mxu0 0
  %147 = vmatprep.subr.bf16.mxu0 0
  %148 = vmatpush2.bf16.msra.mxu0 0
  %149 = vmatprep.subr.bf16.mxu0 0
  %150 = vmatpush2.bf16.msra.mxu0 0
  %151 = vmatprep.mubr.bf16.mxu0 0
  %152 = vmatmul.mubr.bf16.gmra.mxu0 %v108
  %v153 = vpop.f32.mrf.mxu0
  %v154 = vadd.f32 %v49, %v153
  %v155 = vpop.f32.mrf.mxu0
  %v156 = vpop.f32.mrf.mxu0
  %v157 = vadd.f32 %v54, %v156
  %v158 = vpop.f32.mrf.mxu0
  %159 = vmatprep.mubr.bf16.mxu0 0
  %160 = vmatmul.mubr.bf16.gmra.mxu0 %v111
  %v161 = vpop.f32.mrf.mxu0
  %v162 = vadd.f32 %v59, %v161
  %v163 = vpop.f32.mrf.mxu0
  %v164 = vpop.f32.mrf.mxu0
  %v165 = vadd.f32 %v64, %v164
  %v166 = vpop.f32.mrf.mxu0
  %167 = vmatprep.mubr.bf16.mxu0 0
  %168 = vmatmul.mubr.bf16.gmra.mxu0 %v114
  %v169 = vpop.f32.mrf.mxu0
  %v170 = vadd.f32 %v69, %v169
  %v171 = vpop.f32.mrf.mxu0
  %v172 = vpop.f32.mrf.mxu0
  %v173 = vadd.f32 %v74, %v172
  %v174 = vpop.f32.mrf.mxu0
  %175 = vmatprep.mubr.bf16.mxu0 0
  %176 = vmatmul.mubr.bf16.gmra.mxu0 %v117
  %v177 = vpop.f32.mrf.mxu0
  %v178 = vadd.f32 %v79, %v177
  %v179 = vpop.f32.mrf.mxu0
  %v180 = vpop.f32.mrf.mxu0
  %v181 = vadd.f32 %v84, %v180
  %v182 = vpop.f32.mrf.mxu0
  %183 = vdwg.mxu0
  %v184 = vmax.f32 %v154, 0.0
  %v185 = vmax.f32 %v157, 0.0
  %v186 = vmax.f32 %v162, 0.0
  %v187 = vmax.f32 %v165, 0.0
  %v188 = vmax.f32 %v170, 0.0
  %v189 = vmax.f32 %v173, 0.0
  %v190 = vmax.f32 %v178, 0.0
  %v191 = vmax.f32 %v181, 0.0
  %v192 = vld [vmem:[%s2] sm:$0xf]
  %v193 = vld [vmem:[%s2 + $0x4] sm:$0xf]
  %v194 = vld [vmem:[%s2 + $0x8] sm:$0xf]
  %v195 = vld [vmem:[%s2 + $0xc] sm:$0xf]
  %v196 = vld [vmem:[%s2 + $0x10] sm:$0xf]
  %v197 = vld [vmem:[%s2 + $0x14] sm:$0xf]
  %v198 = vld [vmem:[%s2 + $0x18] sm:$0xf]
  %v199 = vld [vmem:[%s2 + $0x1c] sm:$0xf]
  %v200 = vpack.c.bf16 %v185, %v184
  %v201 = vpack.c.bf16 %v187, %v186
  %v202 = vpack.c.bf16 %v189, %v188
  %v203 = vpack.c.bf16 %v191, %v190
  %s204 = scalar_lea.vmem %s3, 64
  %v205 = vld [vmem:[%s204] sm:$0xff]
  %v206 = vld [vmem:[%s204 + $0x8] sm:$0xff]
  %v207 = vld [vmem:[%s204 + $0x10] sm:$0xff]
  %v208 = vld [vmem:[%s204 + $0x18] sm:$0xff]
  %v209 = vld [vmem:[%s204 + $0x20] sm:$0xff]
  %v210 = vld [vmem:[%s204 + $0x28] sm:$0xff]
  %v211 = vld [vmem:[%s204 + $0x30] sm:$0xff]
  %v212 = vld [vmem:[%s204 + $0x38] sm:$0xff]
  %214 = vset.pattern.permute.xlu0 0
  %215 = vperm.xlu0 %214, %v205
  %v216 = vpop.permute.xlu0 %215
  %219 = vset.pattern.permute.xlu0 0
  %220 = vperm.xlu0 %219, %v206
  %v221 = vpop.permute.xlu0 %220
  %224 = vset.pattern.permute.xlu0 0
  %225 = vperm.xlu0 %224, %v207
  %v226 = vpop.permute.xlu0 %225
  %229 = vset.pattern.permute.xlu0 0
  %230 = vperm.xlu0 %229, %v208
  %v231 = vpop.permute.xlu0 %230
  %234 = vset.pattern.permute.xlu0 0
  %235 = vperm.xlu0 %234, %v209
  %v236 = vpop.permute.xlu0 %235
  %239 = vset.pattern.permute.xlu0 0
  %240 = vperm.xlu0 %239, %v210
  %v241 = vpop.permute.xlu0 %240
  %244 = vset.pattern.permute.xlu0 0
  %245 = vperm.xlu0 %244, %v211
  %v246 = vpop.permute.xlu0 %245
  %249 = vset.pattern.permute.xlu0 0
  %250 = vperm.xlu0 %249, %v212
  %v251 = vpop.permute.xlu0 %250
  %v261 = vunpack.c.l.b16 %v192
  %v262 = vunpack.c.l.b16 %v193
  %v263 = vunpack.c.l.b16 %v194
  %v264 = vunpack.c.l.b16 %v195
  %v265 = vunpack.c.l.b16 %v196
  %v266 = vunpack.c.l.b16 %v197
  %v267 = vunpack.c.l.b16 %v198
  %v268 = vunpack.c.l.b16 %v199
  %v269 = vpack.c.b16 %v262, %v261
  %v270 = vpack.c.b16 %v264, %v263
  %v271 = vpack.c.b16 %v266, %v265
  %v272 = vpack.c.b16 %v268, %v267
  %vm273 = vcmask 523264
  %v275 = vsel %vm273, %v269, 0
  %v278 = vsel %vm273, %v270, 0
  %v281 = vsel %vm273, %v271, 0
  %v284 = vsel %vm273, %v272, 0
  %286 = vmatprep.subr.bf16.mxu0 0
  %287 = vmatpush1.bf16.msra.mxu0 0
  %288 = vmatprep.subr.bf16.mxu0 0
  %289 = vmatpush1.bf16.msra.mxu0 0
  %290 = vmatprep.subr.bf16.mxu0 0
  %291 = vmatpush1.bf16.msra.mxu0 0
  %292 = vmatprep.subr.bf16.mxu0 0
  %293 = vmatpush1.bf16.msra.mxu0 0
  %294 = vmatprep.subr.bf16.mxu0 0
  %295 = vmatpush1.bf16.msra.mxu0 %v203
  %296 = vmatprep.subr.bf16.mxu0 0
  %297 = vmatpush1.bf16.msra.mxu0 %v202
  %298 = vmatprep.subr.bf16.mxu0 0
  %299 = vmatpush1.bf16.msra.mxu0 %v201
  %300 = vmatprep.subr.bf16.mxu0 0
  %301 = vmatpush1.bf16.msra.mxu0 %v200
  %302 = vmatprep.subr.bf16.mxu0 0
  %303 = vmatpush2.bf16.msra.mxu0 0
  %304 = vmatprep.subr.bf16.mxu0 0
  %305 = vmatpush2.bf16.msra.mxu0 0
  %306 = vmatprep.subr.bf16.mxu0 0
  %307 = vmatpush2.bf16.msra.mxu0 0
  %308 = vmatprep.subr.bf16.mxu0 0
  %309 = vmatpush2.bf16.msra.mxu0 0
  %310 = vmatprep.subr.bf16.mxu0 0
  %311 = vmatpush2.bf16.msra.mxu0 0
  %312 = vmatprep.subr.bf16.mxu0 0
  %313 = vmatpush2.bf16.msra.mxu0 0
  %314 = vmatprep.subr.bf16.mxu0 0
  %315 = vmatpush2.bf16.msra.mxu0 0
  %316 = vmatprep.subr.bf16.mxu0 0
  %317 = vmatpush2.bf16.msra.mxu0 0
  %318 = vmatprep.mubr.bf16.mxu0 0
  %319 = vmatmul.mubr.bf16.gmra.mxu0 %v275
  %v320 = vpop.f32.mrf.mxu0
  %v321 = vadd.f32 %v216, %v320
  %v322 = vpop.f32.mrf.mxu0
  %v323 = vpop.f32.mrf.mxu0
  %v324 = vadd.f32 %v221, %v323
  %v325 = vpop.f32.mrf.mxu0
  %326 = vmatprep.mubr.bf16.mxu0 0
  %327 = vmatmul.mubr.bf16.gmra.mxu0 %v278
  %v328 = vpop.f32.mrf.mxu0
  %v329 = vadd.f32 %v226, %v328
  %v330 = vpop.f32.mrf.mxu0
  %v331 = vpop.f32.mrf.mxu0
  %v332 = vadd.f32 %v231, %v331
  %v333 = vpop.f32.mrf.mxu0
  %334 = vmatprep.mubr.bf16.mxu0 0
  %335 = vmatmul.mubr.bf16.gmra.mxu0 %v281
  %v336 = vpop.f32.mrf.mxu0
  %v337 = vadd.f32 %v236, %v336
  %v338 = vpop.f32.mrf.mxu0
  %v339 = vpop.f32.mrf.mxu0
  %v340 = vadd.f32 %v241, %v339
  %v341 = vpop.f32.mrf.mxu0
  %342 = vmatprep.mubr.bf16.mxu0 0
  %343 = vmatmul.mubr.bf16.gmra.mxu0 %v284
  %v344 = vpop.f32.mrf.mxu0
  %v345 = vadd.f32 %v246, %v344
  %v346 = vpop.f32.mrf.mxu0
  %v347 = vpop.f32.mrf.mxu0
  %v348 = vadd.f32 %v251, %v347
  %v349 = vpop.f32.mrf.mxu0
  %350 = vdwg.mxu0
  %v351 = vmax.f32 %v321, 0.0
  %v352 = vmax.f32 %v324, 0.0
  %v353 = vmax.f32 %v329, 0.0
  %v354 = vmax.f32 %v332, 0.0
  %v355 = vmax.f32 %v337, 0.0
  %v356 = vmax.f32 %v340, 0.0
  %v357 = vmax.f32 %v345, 0.0
  %v358 = vmax.f32 %v348, 0.0
  %s359 = scalar_lea.vmem %s2, 32
  %v360 = vld [vmem:[%s359] sm:$0xf]
  %v361 = vld [vmem:[%s359 + $0x4] sm:$0xf]
  %v362 = vld [vmem:[%s359 + $0x8] sm:$0xf]
  %v363 = vld [vmem:[%s359 + $0xc] sm:$0xf]
  %v364 = vld [vmem:[%s359 + $0x10] sm:$0xf]
  %v365 = vld [vmem:[%s359 + $0x14] sm:$0xf]
  %v366 = vld [vmem:[%s359 + $0x18] sm:$0xf]
  %v367 = vld [vmem:[%s359 + $0x1c] sm:$0xf]
  %v368 = vpack.c.bf16 %v352, %v351
  %v369 = vpack.c.bf16 %v354, %v353
  %v370 = vpack.c.bf16 %v356, %v355
  %v371 = vpack.c.bf16 %v358, %v357
  %s372 = scalar_lea.vmem %s3, 128
  %v373 = vld [vmem:[%s372] sm:$0xff]
  %v374 = vld [vmem:[%s372 + $0x8] sm:$0xff]
  %v375 = vld [vmem:[%s372 + $0x10] sm:$0xff]
  %v376 = vld [vmem:[%s372 + $0x18] sm:$0xff]
  %v377 = vld [vmem:[%s372 + $0x20] sm:$0xff]
  %v378 = vld [vmem:[%s372 + $0x28] sm:$0xff]
  %v379 = vld [vmem:[%s372 + $0x30] sm:$0xff]
  %v380 = vld [vmem:[%s372 + $0x38] sm:$0xff]
  %382 = vset.pattern.permute.xlu0 0
  %383 = vperm.xlu0 %382, %v373
  %v384 = vpop.permute.xlu0 %383
  %387 = vset.pattern.permute.xlu0 0
  %388 = vperm.xlu0 %387, %v374
  %v389 = vpop.permute.xlu0 %388
  %392 = vset.pattern.permute.xlu0 0
  %393 = vperm.xlu0 %392, %v375
  %v394 = vpop.permute.xlu0 %393
  %397 = vset.pattern.permute.xlu0 0
  %398 = vperm.xlu0 %397, %v376
  %v399 = vpop.permute.xlu0 %398
  %402 = vset.pattern.permute.xlu0 0
  %403 = vperm.xlu0 %402, %v377
  %v404 = vpop.permute.xlu0 %403
  %407 = vset.pattern.permute.xlu0 0
  %408 = vperm.xlu0 %407, %v378
  %v409 = vpop.permute.xlu0 %408
  %412 = vset.pattern.permute.xlu0 0
  %413 = vperm.xlu0 %412, %v379
  %v414 = vpop.permute.xlu0 %413
  %417 = vset.pattern.permute.xlu0 0
  %418 = vperm.xlu0 %417, %v380
  %v419 = vpop.permute.xlu0 %418
  %v429 = vunpack.c.l.b16 %v360
  %v430 = vunpack.c.l.b16 %v361
  %v431 = vunpack.c.l.b16 %v362
  %v432 = vunpack.c.l.b16 %v363
  %v433 = vunpack.c.l.b16 %v364
  %v434 = vunpack.c.l.b16 %v365
  %v435 = vunpack.c.l.b16 %v366
  %v436 = vunpack.c.l.b16 %v367
  %v437 = vpack.c.b16 %v430, %v429
  %v438 = vpack.c.b16 %v432, %v431
  %v439 = vpack.c.b16 %v434, %v433
  %v440 = vpack.c.b16 %v436, %v435
  %v442 = vsel %vm273, %v437, 0
  %v445 = vsel %vm273, %v438, 0
  %v448 = vsel %vm273, %v439, 0
  %v451 = vsel %vm273, %v440, 0
  %453 = vmatprep.subr.bf16.mxu0 0
  %454 = vmatpush1.bf16.msra.mxu0 0
  %455 = vmatprep.subr.bf16.mxu0 0
  %456 = vmatpush1.bf16.msra.mxu0 0
  %457 = vmatprep.subr.bf16.mxu0 0
  %458 = vmatpush1.bf16.msra.mxu0 0
  %459 = vmatprep.subr.bf16.mxu0 0
  %460 = vmatpush1.bf16.msra.mxu0 0
  %461 = vmatprep.subr.bf16.mxu0 0
  %462 = vmatpush1.bf16.msra.mxu0 %v371
  %463 = vmatprep.subr.bf16.mxu0 0
  %464 = vmatpush1.bf16.msra.mxu0 %v370
  %465 = vmatprep.subr.bf16.mxu0 0
  %466 = vmatpush1.bf16.msra.mxu0 %v369
  %467 = vmatprep.subr.bf16.mxu0 0
  %468 = vmatpush1.bf16.msra.mxu0 %v368
  %469 = vmatprep.subr.bf16.mxu0 0
  %470 = vmatpush2.bf16.msra.mxu0 0
  %471 = vmatprep.subr.bf16.mxu0 0
  %472 = vmatpush2.bf16.msra.mxu0 0
  %473 = vmatprep.subr.bf16.mxu0 0
  %474 = vmatpush2.bf16.msra.mxu0 0
  %475 = vmatprep.subr.bf16.mxu0 0
  %476 = vmatpush2.bf16.msra.mxu0 0
  %477 = vmatprep.subr.bf16.mxu0 0
  %478 = vmatpush2.bf16.msra.mxu0 0
  %479 = vmatprep.subr.bf16.mxu0 0
  %480 = vmatpush2.bf16.msra.mxu0 0
  %481 = vmatprep.subr.bf16.mxu0 0
  %482 = vmatpush2.bf16.msra.mxu0 0
  %483 = vmatprep.subr.bf16.mxu0 0
  %484 = vmatpush2.bf16.msra.mxu0 0
  %485 = vmatprep.mubr.bf16.mxu0 0
  %486 = vmatmul.mubr.bf16.gmra.mxu0 %v442
  %v487 = vpop.f32.mrf.mxu0
  %v488 = vadd.f32 %v384, %v487
  %v489 = vpop.f32.mrf.mxu0
  %v490 = vpop.f32.mrf.mxu0
  %v491 = vadd.f32 %v389, %v490
  %v492 = vpop.f32.mrf.mxu0
  %493 = vmatprep.mubr.bf16.mxu0 0
  %494 = vmatmul.mubr.bf16.gmra.mxu0 %v445
  %v495 = vpop.f32.mrf.mxu0
  %v496 = vadd.f32 %v394, %v495
  %v497 = vpop.f32.mrf.mxu0
  %v498 = vpop.f32.mrf.mxu0
  %v499 = vadd.f32 %v399, %v498
  %v500 = vpop.f32.mrf.mxu0
  %501 = vmatprep.mubr.bf16.mxu0 0
  %502 = vmatmul.mubr.bf16.gmra.mxu0 %v448
  %v503 = vpop.f32.mrf.mxu0
  %v504 = vadd.f32 %v404, %v503
  %v505 = vpop.f32.mrf.mxu0
  %v506 = vpop.f32.mrf.mxu0
  %v507 = vadd.f32 %v409, %v506
  %v508 = vpop.f32.mrf.mxu0
  %509 = vmatprep.mubr.bf16.mxu0 0
  %510 = vmatmul.mubr.bf16.gmra.mxu0 %v451
  %v511 = vpop.f32.mrf.mxu0
  %v512 = vadd.f32 %v414, %v511
  %v513 = vpop.f32.mrf.mxu0
  %v514 = vpop.f32.mrf.mxu0
  %v515 = vadd.f32 %v419, %v514
  %v516 = vpop.f32.mrf.mxu0
  %517 = vdwg.mxu0
  %v518 = vld [vmem:[%s5] sm:$0x1]
  %v519 = vld [vmem:[%s4] sm:$0xff]
  %v520 = vld [vmem:[%s4 + $0x8] sm:$0xff]
  %v521 = vld [vmem:[%s4 + $0x10] sm:$0xff]
  %v522 = vld [vmem:[%s4 + $0x18] sm:$0xff]
  %v523 = vld [vmem:[%s4 + $0x20] sm:$0xff]
  %v524 = vld [vmem:[%s4 + $0x28] sm:$0xff]
  %v525 = vld [vmem:[%s4 + $0x30] sm:$0xff]
  %v526 = vld [vmem:[%s4 + $0x38] sm:$0xff]
  %v528 = vlaneseq
  %v529 = vshrl.u32 %v528, 7
  %v530 = vsub.s32 0, %v529
  %v531 = vrot.slane %v518, %v530
  %v533 = vmul.f32 %v519, %v531
  %v534 = vmul.f32 %v520, %v531
  %v535 = vmul.f32 %v521, %v531
  %v536 = vmul.f32 %v522, %v531
  %v537 = vmul.f32 %v523, %v531
  %v538 = vmul.f32 %v524, %v531
  %v539 = vmul.f32 %v525, %v531
  %v540 = vmul.f32 %v526, %v531
  %vm541 = vcmask 64512
  %v542 = vsel %vm541, %v533, 0.0
  %543 = vadd.xlane.f32.xlu0 %v542
  %v544 = vpop.xlane.xlu0 %543
  %v545 = vsel %vm541, %v534, 0.0
  %546 = vadd.xlane.f32.xlu0 %v545
  %v547 = vpop.xlane.xlu0 %546
  %v548 = vsel %vm541, %v535, 0.0
  %549 = vadd.xlane.f32.xlu0 %v548
  %v550 = vpop.xlane.xlu0 %549
  %v551 = vsel %vm541, %v536, 0.0
  %552 = vadd.xlane.f32.xlu0 %v551
  %v553 = vpop.xlane.xlu0 %552
  %v554 = vsel %vm541, %v537, 0.0
  %555 = vadd.xlane.f32.xlu0 %v554
  %v556 = vpop.xlane.xlu0 %555
  %v557 = vsel %vm541, %v538, 0.0
  %558 = vadd.xlane.f32.xlu0 %v557
  %v559 = vpop.xlane.xlu0 %558
  %v560 = vsel %vm541, %v539, 0.0
  %561 = vadd.xlane.f32.xlu0 %v560
  %v562 = vpop.xlane.xlu0 %561
  %v563 = vsel %vm541, %v540, 0.0
  %564 = vadd.xlane.f32.xlu0 %v563
  %v565 = vpop.xlane.xlu0 %564
  %s566 = scalar_lea.vmem %s4, 64
  %v567 = vld [vmem:[%s566] sm:$0xff]
  %v568 = vld [vmem:[%s566 + $0x8] sm:$0xff]
  %v569 = vld [vmem:[%s566 + $0x10] sm:$0xff]
  %v570 = vld [vmem:[%s566 + $0x18] sm:$0xff]
  %v571 = vld [vmem:[%s566 + $0x20] sm:$0xff]
  %v572 = vld [vmem:[%s566 + $0x28] sm:$0xff]
  %v573 = vld [vmem:[%s566 + $0x30] sm:$0xff]
  %v574 = vld [vmem:[%s566 + $0x38] sm:$0xff]
  %v575 = vmul.f32 %v567, %v531
  %v576 = vmul.f32 %v568, %v531
  %v577 = vmul.f32 %v569, %v531
  %v578 = vmul.f32 %v570, %v531
  %v579 = vmul.f32 %v571, %v531
  %v580 = vmul.f32 %v572, %v531
  %v581 = vmul.f32 %v573, %v531
  %v582 = vmul.f32 %v574, %v531
  %v583 = vsel %vm541, %v575, 0.0
  %584 = vadd.xlane.f32.xlu0 %v583
  %v585 = vpop.xlane.xlu0 %584
  %v586 = vsel %vm541, %v576, 0.0
  %587 = vadd.xlane.f32.xlu0 %v586
  %v588 = vpop.xlane.xlu0 %587
  %v589 = vsel %vm541, %v577, 0.0
  %590 = vadd.xlane.f32.xlu0 %v589
  %v591 = vpop.xlane.xlu0 %590
  %v592 = vsel %vm541, %v578, 0.0
  %593 = vadd.xlane.f32.xlu0 %v592
  %v594 = vpop.xlane.xlu0 %593
  %v595 = vsel %vm541, %v579, 0.0
  %596 = vadd.xlane.f32.xlu0 %v595
  %v597 = vpop.xlane.xlu0 %596
  %v598 = vsel %vm541, %v580, 0.0
  %599 = vadd.xlane.f32.xlu0 %v598
  %v600 = vpop.xlane.xlu0 %599
  %v601 = vsel %vm541, %v581, 0.0
  %602 = vadd.xlane.f32.xlu0 %v601
  %v603 = vpop.xlane.xlu0 %602
  %v604 = vsel %vm541, %v582, 0.0
  %605 = vadd.xlane.f32.xlu0 %v604
  %v606 = vpop.xlane.xlu0 %605
  %s607 = scalar_lea.vmem %s2, 64
  %v608 = vld [vmem:[%s607] sm:$0xf]
  %v609 = vld [vmem:[%s607 + $0x4] sm:$0xf]
  %v610 = vld [vmem:[%s607 + $0x8] sm:$0xf]
  %v611 = vld [vmem:[%s607 + $0xc] sm:$0xf]
  %v612 = vld [vmem:[%s607 + $0x10] sm:$0xf]
  %v613 = vld [vmem:[%s607 + $0x14] sm:$0xf]
  %v614 = vld [vmem:[%s607 + $0x18] sm:$0xf]
  %v615 = vld [vmem:[%s607 + $0x1c] sm:$0xf]
  %v616 = vpack.c.bf16 %v491, %v488
  %v617 = vpack.c.bf16 %v499, %v496
  %v618 = vpack.c.bf16 %v507, %v504
  %v619 = vpack.c.bf16 %v515, %v512
  %s620 = scalar_lea.vmem %s3, 192
  %v621 = vld [vmem:[%s620] sm:$0xff]
  %v622 = vld [vmem:[%s620 + $0x8] sm:$0xff]
  %v623 = vld [vmem:[%s620 + $0x10] sm:$0xff]
  %v624 = vld [vmem:[%s620 + $0x18] sm:$0xff]
  %v625 = vld [vmem:[%s620 + $0x20] sm:$0xff]
  %v626 = vld [vmem:[%s620 + $0x28] sm:$0xff]
  %v627 = vld [vmem:[%s620 + $0x30] sm:$0xff]
  %v628 = vld [vmem:[%s620 + $0x38] sm:$0xff]
  %630 = vset.pattern.permute.xlu0 0
  %631 = vperm.xlu0 %630, %v621
  %v632 = vpop.permute.xlu0 %631
  %635 = vset.pattern.permute.xlu0 0
  %636 = vperm.xlu0 %635, %v622
  %v637 = vpop.permute.xlu0 %636
  %640 = vset.pattern.permute.xlu0 0
  %641 = vperm.xlu0 %640, %v623
  %v642 = vpop.permute.xlu0 %641
  %645 = vset.pattern.permute.xlu0 0
  %646 = vperm.xlu0 %645, %v624
  %v647 = vpop.permute.xlu0 %646
  %650 = vset.pattern.permute.xlu0 0
  %651 = vperm.xlu0 %650, %v625
  %v652 = vpop.permute.xlu0 %651
  %655 = vset.pattern.permute.xlu0 0
  %656 = vperm.xlu0 %655, %v626
  %v657 = vpop.permute.xlu0 %656
  %660 = vset.pattern.permute.xlu0 0
  %661 = vperm.xlu0 %660, %v627
  %v662 = vpop.permute.xlu0 %661
  %665 = vset.pattern.permute.xlu0 0
  %666 = vperm.xlu0 %665, %v628
  %v667 = vpop.permute.xlu0 %666
  %v677 = vunpack.c.l.b16 %v608
  %v678 = vunpack.c.l.b16 %v609
  %v679 = vunpack.c.l.b16 %v610
  %v680 = vunpack.c.l.b16 %v611
  %v681 = vunpack.c.l.b16 %v612
  %v682 = vunpack.c.l.b16 %v613
  %v683 = vunpack.c.l.b16 %v614
  %v684 = vunpack.c.l.b16 %v615
  %v685 = vpack.c.b16 %v678, %v677
  %v686 = vpack.c.b16 %v680, %v679
  %v687 = vpack.c.b16 %v682, %v681
  %v688 = vpack.c.b16 %v684, %v683
  %v690 = vsel %vm273, %v685, 0
  %v693 = vsel %vm273, %v686, 0
  %v696 = vsel %vm273, %v687, 0
  %v699 = vsel %vm273, %v688, 0
  %701 = vmatprep.subr.bf16.mxu0 0
  %702 = vmatpush1.bf16.msra.mxu0 0
  %703 = vmatprep.subr.bf16.mxu0 0
  %704 = vmatpush1.bf16.msra.mxu0 0
  %705 = vmatprep.subr.bf16.mxu0 0
  %706 = vmatpush1.bf16.msra.mxu0 0
  %707 = vmatprep.subr.bf16.mxu0 0
  %708 = vmatpush1.bf16.msra.mxu0 0
  %709 = vmatprep.subr.bf16.mxu0 0
  %710 = vmatpush1.bf16.msra.mxu0 %v619
  %711 = vmatprep.subr.bf16.mxu0 0
  %712 = vmatpush1.bf16.msra.mxu0 %v618
  %713 = vmatprep.subr.bf16.mxu0 0
  %714 = vmatpush1.bf16.msra.mxu0 %v617
  %715 = vmatprep.subr.bf16.mxu0 0
  %716 = vmatpush1.bf16.msra.mxu0 %v616
  %717 = vmatprep.subr.bf16.mxu0 0
  %718 = vmatpush2.bf16.msra.mxu0 0
  %719 = vmatprep.subr.bf16.mxu0 0
  %720 = vmatpush2.bf16.msra.mxu0 0
  %721 = vmatprep.subr.bf16.mxu0 0
  %722 = vmatpush2.bf16.msra.mxu0 0
  %723 = vmatprep.subr.bf16.mxu0 0
  %724 = vmatpush2.bf16.msra.mxu0 0
  %725 = vmatprep.subr.bf16.mxu0 0
  %726 = vmatpush2.bf16.msra.mxu0 0
  %727 = vmatprep.subr.bf16.mxu0 0
  %728 = vmatpush2.bf16.msra.mxu0 0
  %729 = vmatprep.subr.bf16.mxu0 0
  %730 = vmatpush2.bf16.msra.mxu0 0
  %731 = vmatprep.subr.bf16.mxu0 0
  %732 = vmatpush2.bf16.msra.mxu0 0
  %733 = vmatprep.mubr.bf16.mxu0 0
  %734 = vmatmul.mubr.bf16.gmra.mxu0 %v690
  %v735 = vpop.f32.mrf.mxu0
  %v736 = vadd.f32 %v632, %v735
  %v737 = vpop.f32.mrf.mxu0
  %v738 = vpop.f32.mrf.mxu0
  %v739 = vadd.f32 %v637, %v738
  %v740 = vpop.f32.mrf.mxu0
  %741 = vmatprep.mubr.bf16.mxu0 0
  %742 = vmatmul.mubr.bf16.gmra.mxu0 %v693
  %v743 = vpop.f32.mrf.mxu0
  %v744 = vadd.f32 %v642, %v743
  %v745 = vpop.f32.mrf.mxu0
  %v746 = vpop.f32.mrf.mxu0
  %v747 = vadd.f32 %v647, %v746
  %v748 = vpop.f32.mrf.mxu0
  %749 = vmatprep.mubr.bf16.mxu0 0
  %750 = vmatmul.mubr.bf16.gmra.mxu0 %v696
  %v751 = vpop.f32.mrf.mxu0
  %v752 = vadd.f32 %v652, %v751
  %v753 = vpop.f32.mrf.mxu0
  %v754 = vpop.f32.mrf.mxu0
  %v755 = vadd.f32 %v657, %v754
  %v756 = vpop.f32.mrf.mxu0
  %757 = vmatprep.mubr.bf16.mxu0 0
  %758 = vmatmul.mubr.bf16.gmra.mxu0 %v699
  %v759 = vpop.f32.mrf.mxu0
  %v760 = vadd.f32 %v662, %v759
  %v761 = vpop.f32.mrf.mxu0
  %v762 = vpop.f32.mrf.mxu0
  %v763 = vadd.f32 %v667, %v762
  %v764 = vpop.f32.mrf.mxu0
  %765 = vdwg.mxu0
  %v766 = vadd.f32 %v736, %v544
  %v767 = vadd.f32 %v739, %v547
  %v768 = vadd.f32 %v744, %v550
  %v769 = vadd.f32 %v747, %v553
  %v770 = vadd.f32 %v752, %v556
  %v771 = vadd.f32 %v755, %v559
  %v772 = vadd.f32 %v760, %v562
  %v773 = vadd.f32 %v763, %v565
  %v774 = vmax.f32 %v766, 0.0
  %v775 = vmax.f32 %v767, 0.0
  %v776 = vmax.f32 %v768, 0.0
  %v777 = vmax.f32 %v769, 0.0
  %v778 = vmax.f32 %v770, 0.0
  %v779 = vmax.f32 %v771, 0.0
  %v780 = vmax.f32 %v772, 0.0
  %v781 = vmax.f32 %v773, 0.0
  %s782 = scalar_lea.vmem %s2, 96
  %v783 = vld [vmem:[%s782] sm:$0xf]
  %v784 = vld [vmem:[%s782 + $0x4] sm:$0xf]
  %v785 = vld [vmem:[%s782 + $0x8] sm:$0xf]
  %v786 = vld [vmem:[%s782 + $0xc] sm:$0xf]
  %v787 = vld [vmem:[%s782 + $0x10] sm:$0xf]
  %v788 = vld [vmem:[%s782 + $0x14] sm:$0xf]
  %v789 = vld [vmem:[%s782 + $0x18] sm:$0xf]
  %v790 = vld [vmem:[%s782 + $0x1c] sm:$0xf]
  %v791 = vpack.c.bf16 %v775, %v774
  %v792 = vpack.c.bf16 %v777, %v776
  %v793 = vpack.c.bf16 %v779, %v778
  %v794 = vpack.c.bf16 %v781, %v780
  %s795 = scalar_lea.vmem %s3, 256
  %v796 = vld [vmem:[%s795] sm:$0xff]
  %v797 = vld [vmem:[%s795 + $0x8] sm:$0xff]
  %v798 = vld [vmem:[%s795 + $0x10] sm:$0xff]
  %v799 = vld [vmem:[%s795 + $0x18] sm:$0xff]
  %v800 = vld [vmem:[%s795 + $0x20] sm:$0xff]
  %v801 = vld [vmem:[%s795 + $0x28] sm:$0xff]
  %v802 = vld [vmem:[%s795 + $0x30] sm:$0xff]
  %v803 = vld [vmem:[%s795 + $0x38] sm:$0xff]
  %805 = vset.pattern.permute.xlu0 0
  %806 = vperm.xlu0 %805, %v796
  %v807 = vpop.permute.xlu0 %806
  %810 = vset.pattern.permute.xlu0 0
  %811 = vperm.xlu0 %810, %v797
  %v812 = vpop.permute.xlu0 %811
  %815 = vset.pattern.permute.xlu0 0
  %816 = vperm.xlu0 %815, %v798
  %v817 = vpop.permute.xlu0 %816
  %820 = vset.pattern.permute.xlu0 0
  %821 = vperm.xlu0 %820, %v799
  %v822 = vpop.permute.xlu0 %821
  %825 = vset.pattern.permute.xlu0 0
  %826 = vperm.xlu0 %825, %v800
  %v827 = vpop.permute.xlu0 %826
  %830 = vset.pattern.permute.xlu0 0
  %831 = vperm.xlu0 %830, %v801
  %v832 = vpop.permute.xlu0 %831
  %835 = vset.pattern.permute.xlu0 0
  %836 = vperm.xlu0 %835, %v802
  %v837 = vpop.permute.xlu0 %836
  %840 = vset.pattern.permute.xlu0 0
  %841 = vperm.xlu0 %840, %v803
  %v842 = vpop.permute.xlu0 %841
  %v852 = vunpack.c.l.b16 %v783
  %v853 = vunpack.c.l.b16 %v784
  %v854 = vunpack.c.l.b16 %v785
  %v855 = vunpack.c.l.b16 %v786
  %v856 = vunpack.c.l.b16 %v787
  %v857 = vunpack.c.l.b16 %v788
  %v858 = vunpack.c.l.b16 %v789
  %v859 = vunpack.c.l.b16 %v790
  %v860 = vpack.c.b16 %v853, %v852
  %v861 = vpack.c.b16 %v855, %v854
  %v862 = vpack.c.b16 %v857, %v856
  %v863 = vpack.c.b16 %v859, %v858
  %v865 = vsel %vm273, %v860, 0
  %v868 = vsel %vm273, %v861, 0
  %v871 = vsel %vm273, %v862, 0
  %v874 = vsel %vm273, %v863, 0
  %876 = vmatprep.subr.bf16.mxu0 0
  %877 = vmatpush1.bf16.msra.mxu0 0
  %878 = vmatprep.subr.bf16.mxu0 0
  %879 = vmatpush1.bf16.msra.mxu0 0
  %880 = vmatprep.subr.bf16.mxu0 0
  %881 = vmatpush1.bf16.msra.mxu0 0
  %882 = vmatprep.subr.bf16.mxu0 0
  %883 = vmatpush1.bf16.msra.mxu0 0
  %884 = vmatprep.subr.bf16.mxu0 0
  %885 = vmatpush1.bf16.msra.mxu0 %v794
  %886 = vmatprep.subr.bf16.mxu0 0
  %887 = vmatpush1.bf16.msra.mxu0 %v793
  %888 = vmatprep.subr.bf16.mxu0 0
  %889 = vmatpush1.bf16.msra.mxu0 %v792
  %890 = vmatprep.subr.bf16.mxu0 0
  %891 = vmatpush1.bf16.msra.mxu0 %v791
  %892 = vmatprep.subr.bf16.mxu0 0
  %893 = vmatpush2.bf16.msra.mxu0 0
  %894 = vmatprep.subr.bf16.mxu0 0
  %895 = vmatpush2.bf16.msra.mxu0 0
  %896 = vmatprep.subr.bf16.mxu0 0
  %897 = vmatpush2.bf16.msra.mxu0 0
  %898 = vmatprep.subr.bf16.mxu0 0
  %899 = vmatpush2.bf16.msra.mxu0 0
  %900 = vmatprep.subr.bf16.mxu0 0
  %901 = vmatpush2.bf16.msra.mxu0 0
  %902 = vmatprep.subr.bf16.mxu0 0
  %903 = vmatpush2.bf16.msra.mxu0 0
  %904 = vmatprep.subr.bf16.mxu0 0
  %905 = vmatpush2.bf16.msra.mxu0 0
  %906 = vmatprep.subr.bf16.mxu0 0
  %907 = vmatpush2.bf16.msra.mxu0 0
  %908 = vmatprep.mubr.bf16.mxu0 0
  %909 = vmatmul.mubr.bf16.gmra.mxu0 %v865
  %v910 = vpop.f32.mrf.mxu0
  %v911 = vadd.f32 %v807, %v910
  %v912 = vpop.f32.mrf.mxu0
  %v913 = vpop.f32.mrf.mxu0
  %v914 = vadd.f32 %v812, %v913
  %v915 = vpop.f32.mrf.mxu0
  %916 = vmatprep.mubr.bf16.mxu0 0
  %917 = vmatmul.mubr.bf16.gmra.mxu0 %v868
  %v918 = vpop.f32.mrf.mxu0
  %v919 = vadd.f32 %v817, %v918
  %v920 = vpop.f32.mrf.mxu0
  %v921 = vpop.f32.mrf.mxu0
  %v922 = vadd.f32 %v822, %v921
  %v923 = vpop.f32.mrf.mxu0
  %924 = vmatprep.mubr.bf16.mxu0 0
  %925 = vmatmul.mubr.bf16.gmra.mxu0 %v871
  %v926 = vpop.f32.mrf.mxu0
  %v927 = vadd.f32 %v827, %v926
  %v928 = vpop.f32.mrf.mxu0
  %v929 = vpop.f32.mrf.mxu0
  %v930 = vadd.f32 %v832, %v929
  %v931 = vpop.f32.mrf.mxu0
  %932 = vmatprep.mubr.bf16.mxu0 0
  %933 = vmatmul.mubr.bf16.gmra.mxu0 %v874
  %v934 = vpop.f32.mrf.mxu0
  %v935 = vadd.f32 %v837, %v934
  %v936 = vpop.f32.mrf.mxu0
  %v937 = vpop.f32.mrf.mxu0
  %v938 = vadd.f32 %v842, %v937
  %v939 = vpop.f32.mrf.mxu0
  %940 = vdwg.mxu0
  %v941 = vadd.f32 %v911, %v488
  %v942 = vadd.f32 %v914, %v491
  %v943 = vadd.f32 %v919, %v496
  %v944 = vadd.f32 %v922, %v499
  %v945 = vadd.f32 %v927, %v504
  %v946 = vadd.f32 %v930, %v507
  %v947 = vadd.f32 %v935, %v512
  %v948 = vadd.f32 %v938, %v515
  %s949 = scalar_lea.vmem %s2, 128
  %v950 = vld [vmem:[%s949] sm:$0xf]
  %v951 = vld [vmem:[%s949 + $0x4] sm:$0xf]
  %v952 = vld [vmem:[%s949 + $0x8] sm:$0xf]
  %v953 = vld [vmem:[%s949 + $0xc] sm:$0xf]
  %v954 = vld [vmem:[%s949 + $0x10] sm:$0xf]
  %v955 = vld [vmem:[%s949 + $0x14] sm:$0xf]
  %v956 = vld [vmem:[%s949 + $0x18] sm:$0xf]
  %v957 = vld [vmem:[%s949 + $0x1c] sm:$0xf]
  %v958 = vpack.c.bf16 %v942, %v941
  %v959 = vpack.c.bf16 %v944, %v943
  %v960 = vpack.c.bf16 %v946, %v945
  %v961 = vpack.c.bf16 %v948, %v947
  %s962 = scalar_lea.vmem %s3, 320
  %v963 = vld [vmem:[%s962] sm:$0xff]
  %v964 = vld [vmem:[%s962 + $0x8] sm:$0xff]
  %v965 = vld [vmem:[%s962 + $0x10] sm:$0xff]
  %v966 = vld [vmem:[%s962 + $0x18] sm:$0xff]
  %v967 = vld [vmem:[%s962 + $0x20] sm:$0xff]
  %v968 = vld [vmem:[%s962 + $0x28] sm:$0xff]
  %v969 = vld [vmem:[%s962 + $0x30] sm:$0xff]
  %v970 = vld [vmem:[%s962 + $0x38] sm:$0xff]
  %972 = vset.pattern.permute.xlu0 0
  %973 = vperm.xlu0 %972, %v963
  %v974 = vpop.permute.xlu0 %973
  %977 = vset.pattern.permute.xlu0 0
  %978 = vperm.xlu0 %977, %v964
  %v979 = vpop.permute.xlu0 %978
  %982 = vset.pattern.permute.xlu0 0
  %983 = vperm.xlu0 %982, %v965
  %v984 = vpop.permute.xlu0 %983
  %987 = vset.pattern.permute.xlu0 0
  %988 = vperm.xlu0 %987, %v966
  %v989 = vpop.permute.xlu0 %988
  %992 = vset.pattern.permute.xlu0 0
  %993 = vperm.xlu0 %992, %v967
  %v994 = vpop.permute.xlu0 %993
  %997 = vset.pattern.permute.xlu0 0
  %998 = vperm.xlu0 %997, %v968
  %v999 = vpop.permute.xlu0 %998
  %1002 = vset.pattern.permute.xlu0 0
  %1003 = vperm.xlu0 %1002, %v969
  %v1004 = vpop.permute.xlu0 %1003
  %1007 = vset.pattern.permute.xlu0 0
  %1008 = vperm.xlu0 %1007, %v970
  %v1009 = vpop.permute.xlu0 %1008
  %v1019 = vunpack.c.l.b16 %v950
  %v1020 = vunpack.c.l.b16 %v951
  %v1021 = vunpack.c.l.b16 %v952
  %v1022 = vunpack.c.l.b16 %v953
  %v1023 = vunpack.c.l.b16 %v954
  %v1024 = vunpack.c.l.b16 %v955
  %v1025 = vunpack.c.l.b16 %v956
  %v1026 = vunpack.c.l.b16 %v957
  %v1027 = vpack.c.b16 %v1020, %v1019
  %v1028 = vpack.c.b16 %v1022, %v1021
  %v1029 = vpack.c.b16 %v1024, %v1023
  %v1030 = vpack.c.b16 %v1026, %v1025
  %v1032 = vsel %vm273, %v1027, 0
  %v1035 = vsel %vm273, %v1028, 0
  %v1038 = vsel %vm273, %v1029, 0
  %v1041 = vsel %vm273, %v1030, 0
  %1043 = vmatprep.subr.bf16.mxu0 0
  %1044 = vmatpush1.bf16.msra.mxu0 0
  %1045 = vmatprep.subr.bf16.mxu0 0
  %1046 = vmatpush1.bf16.msra.mxu0 0
  %1047 = vmatprep.subr.bf16.mxu0 0
  %1048 = vmatpush1.bf16.msra.mxu0 0
  %1049 = vmatprep.subr.bf16.mxu0 0
  %1050 = vmatpush1.bf16.msra.mxu0 0
  %1051 = vmatprep.subr.bf16.mxu0 0
  %1052 = vmatpush1.bf16.msra.mxu0 %v961
  %1053 = vmatprep.subr.bf16.mxu0 0
  %1054 = vmatpush1.bf16.msra.mxu0 %v960
  %1055 = vmatprep.subr.bf16.mxu0 0
  %1056 = vmatpush1.bf16.msra.mxu0 %v959
  %1057 = vmatprep.subr.bf16.mxu0 0
  %1058 = vmatpush1.bf16.msra.mxu0 %v958
  %1059 = vmatprep.subr.bf16.mxu0 0
  %1060 = vmatpush2.bf16.msra.mxu0 0
  %1061 = vmatprep.subr.bf16.mxu0 0
  %1062 = vmatpush2.bf16.msra.mxu0 0
  %1063 = vmatprep.subr.bf16.mxu0 0
  %1064 = vmatpush2.bf16.msra.mxu0 0
  %1065 = vmatprep.subr.bf16.mxu0 0
  %1066 = vmatpush2.bf16.msra.mxu0 0
  %1067 = vmatprep.subr.bf16.mxu0 0
  %1068 = vmatpush2.bf16.msra.mxu0 0
  %1069 = vmatprep.subr.bf16.mxu0 0
  %1070 = vmatpush2.bf16.msra.mxu0 0
  %1071 = vmatprep.subr.bf16.mxu0 0
  %1072 = vmatpush2.bf16.msra.mxu0 0
  %1073 = vmatprep.subr.bf16.mxu0 0
  %1074 = vmatpush2.bf16.msra.mxu0 0
  %1075 = vmatprep.mubr.bf16.mxu0 0
  %1076 = vmatmul.mubr.bf16.gmra.mxu0 %v1032
  %v1077 = vpop.f32.mrf.mxu0
  %v1078 = vadd.f32 %v974, %v1077
  %v1079 = vpop.f32.mrf.mxu0
  %v1080 = vpop.f32.mrf.mxu0
  %v1081 = vadd.f32 %v979, %v1080
  %v1082 = vpop.f32.mrf.mxu0
  %1083 = vmatprep.mubr.bf16.mxu0 0
  %1084 = vmatmul.mubr.bf16.gmra.mxu0 %v1035
  %v1085 = vpop.f32.mrf.mxu0
  %v1086 = vadd.f32 %v984, %v1085
  %v1087 = vpop.f32.mrf.mxu0
  %v1088 = vpop.f32.mrf.mxu0
  %v1089 = vadd.f32 %v989, %v1088
  %v1090 = vpop.f32.mrf.mxu0
  %1091 = vmatprep.mubr.bf16.mxu0 0
  %1092 = vmatmul.mubr.bf16.gmra.mxu0 %v1038
  %v1093 = vpop.f32.mrf.mxu0
  %v1094 = vadd.f32 %v994, %v1093
  %v1095 = vpop.f32.mrf.mxu0
  %v1096 = vpop.f32.mrf.mxu0
  %v1097 = vadd.f32 %v999, %v1096
  %v1098 = vpop.f32.mrf.mxu0
  %1099 = vmatprep.mubr.bf16.mxu0 0
  %1100 = vmatmul.mubr.bf16.gmra.mxu0 %v1041
  %v1101 = vpop.f32.mrf.mxu0
  %v1102 = vadd.f32 %v1004, %v1101
  %v1103 = vpop.f32.mrf.mxu0
  %v1104 = vpop.f32.mrf.mxu0
  %v1105 = vadd.f32 %v1009, %v1104
  %v1106 = vpop.f32.mrf.mxu0
  %1107 = vdwg.mxu0
  %v1108 = vmax.f32 %v1078, 0.0
  %v1109 = vmax.f32 %v1081, 0.0
  %v1110 = vmax.f32 %v1086, 0.0
  %v1111 = vmax.f32 %v1089, 0.0
  %v1112 = vmax.f32 %v1094, 0.0
  %v1113 = vmax.f32 %v1097, 0.0
  %v1114 = vmax.f32 %v1102, 0.0
  %v1115 = vmax.f32 %v1105, 0.0
  %s1116 = scalar_lea.vmem %s2, 160
  %v1117 = vld [vmem:[%s1116] sm:$0xf]
  %v1118 = vld [vmem:[%s1116 + $0x4] sm:$0xf]
  %v1119 = vld [vmem:[%s1116 + $0x8] sm:$0xf]
  %v1120 = vld [vmem:[%s1116 + $0xc] sm:$0xf]
  %v1121 = vld [vmem:[%s1116 + $0x10] sm:$0xf]
  %v1122 = vld [vmem:[%s1116 + $0x14] sm:$0xf]
  %v1123 = vld [vmem:[%s1116 + $0x18] sm:$0xf]
  %v1124 = vld [vmem:[%s1116 + $0x1c] sm:$0xf]
  %v1125 = vpack.c.bf16 %v1109, %v1108
  %v1126 = vpack.c.bf16 %v1111, %v1110
  %v1127 = vpack.c.bf16 %v1113, %v1112
  %v1128 = vpack.c.bf16 %v1115, %v1114
  %s1129 = scalar_lea.vmem %s3, 384
  %v1130 = vld [vmem:[%s1129] sm:$0xff]
  %v1131 = vld [vmem:[%s1129 + $0x8] sm:$0xff]
  %v1132 = vld [vmem:[%s1129 + $0x10] sm:$0xff]
  %v1133 = vld [vmem:[%s1129 + $0x18] sm:$0xff]
  %v1134 = vld [vmem:[%s1129 + $0x20] sm:$0xff]
  %v1135 = vld [vmem:[%s1129 + $0x28] sm:$0xff]
  %v1136 = vld [vmem:[%s1129 + $0x30] sm:$0xff]
  %v1137 = vld [vmem:[%s1129 + $0x38] sm:$0xff]
  %1139 = vset.pattern.permute.xlu0 0
  %1140 = vperm.xlu0 %1139, %v1130
  %v1141 = vpop.permute.xlu0 %1140
  %1144 = vset.pattern.permute.xlu0 0
  %1145 = vperm.xlu0 %1144, %v1131
  %v1146 = vpop.permute.xlu0 %1145
  %1149 = vset.pattern.permute.xlu0 0
  %1150 = vperm.xlu0 %1149, %v1132
  %v1151 = vpop.permute.xlu0 %1150
  %1154 = vset.pattern.permute.xlu0 0
  %1155 = vperm.xlu0 %1154, %v1133
  %v1156 = vpop.permute.xlu0 %1155
  %1159 = vset.pattern.permute.xlu0 0
  %1160 = vperm.xlu0 %1159, %v1134
  %v1161 = vpop.permute.xlu0 %1160
  %1164 = vset.pattern.permute.xlu0 0
  %1165 = vperm.xlu0 %1164, %v1135
  %v1166 = vpop.permute.xlu0 %1165
  %1169 = vset.pattern.permute.xlu0 0
  %1170 = vperm.xlu0 %1169, %v1136
  %v1171 = vpop.permute.xlu0 %1170
  %1174 = vset.pattern.permute.xlu0 0
  %1175 = vperm.xlu0 %1174, %v1137
  %v1176 = vpop.permute.xlu0 %1175
  %v1186 = vunpack.c.l.b16 %v1117
  %v1187 = vunpack.c.l.b16 %v1118
  %v1188 = vunpack.c.l.b16 %v1119
  %v1189 = vunpack.c.l.b16 %v1120
  %v1190 = vunpack.c.l.b16 %v1121
  %v1191 = vunpack.c.l.b16 %v1122
  %v1192 = vunpack.c.l.b16 %v1123
  %v1193 = vunpack.c.l.b16 %v1124
  %v1194 = vpack.c.b16 %v1187, %v1186
  %v1195 = vpack.c.b16 %v1189, %v1188
  %v1196 = vpack.c.b16 %v1191, %v1190
  %v1197 = vpack.c.b16 %v1193, %v1192
  %v1199 = vsel %vm273, %v1194, 0
  %v1202 = vsel %vm273, %v1195, 0
  %v1205 = vsel %vm273, %v1196, 0
  %v1208 = vsel %vm273, %v1197, 0
  %1210 = vmatprep.subr.bf16.mxu0 0
  %1211 = vmatpush1.bf16.msra.mxu0 0
  %1212 = vmatprep.subr.bf16.mxu0 0
  %1213 = vmatpush1.bf16.msra.mxu0 0
  %1214 = vmatprep.subr.bf16.mxu0 0
  %1215 = vmatpush1.bf16.msra.mxu0 0
  %1216 = vmatprep.subr.bf16.mxu0 0
  %1217 = vmatpush1.bf16.msra.mxu0 0
  %1218 = vmatprep.subr.bf16.mxu0 0
  %1219 = vmatpush1.bf16.msra.mxu0 %v1128
  %1220 = vmatprep.subr.bf16.mxu0 0
  %1221 = vmatpush1.bf16.msra.mxu0 %v1127
  %1222 = vmatprep.subr.bf16.mxu0 0
  %1223 = vmatpush1.bf16.msra.mxu0 %v1126
  %1224 = vmatprep.subr.bf16.mxu0 0
  %1225 = vmatpush1.bf16.msra.mxu0 %v1125
  %1226 = vmatprep.subr.bf16.mxu0 0
  %1227 = vmatpush2.bf16.msra.mxu0 0
  %1228 = vmatprep.subr.bf16.mxu0 0
  %1229 = vmatpush2.bf16.msra.mxu0 0
  %1230 = vmatprep.subr.bf16.mxu0 0
  %1231 = vmatpush2.bf16.msra.mxu0 0
  %1232 = vmatprep.subr.bf16.mxu0 0
  %1233 = vmatpush2.bf16.msra.mxu0 0
  %1234 = vmatprep.subr.bf16.mxu0 0
  %1235 = vmatpush2.bf16.msra.mxu0 0
  %1236 = vmatprep.subr.bf16.mxu0 0
  %1237 = vmatpush2.bf16.msra.mxu0 0
  %1238 = vmatprep.subr.bf16.mxu0 0
  %1239 = vmatpush2.bf16.msra.mxu0 0
  %1240 = vmatprep.subr.bf16.mxu0 0
  %1241 = vmatpush2.bf16.msra.mxu0 0
  %1242 = vmatprep.mubr.bf16.mxu0 0
  %1243 = vmatmul.mubr.bf16.gmra.mxu0 %v1199
  %v1244 = vpop.f32.mrf.mxu0
  %v1245 = vadd.f32 %v1141, %v1244
  %v1246 = vpop.f32.mrf.mxu0
  %v1247 = vpop.f32.mrf.mxu0
  %v1248 = vadd.f32 %v1146, %v1247
  %v1249 = vpop.f32.mrf.mxu0
  %1250 = vmatprep.mubr.bf16.mxu0 0
  %1251 = vmatmul.mubr.bf16.gmra.mxu0 %v1202
  %v1252 = vpop.f32.mrf.mxu0
  %v1253 = vadd.f32 %v1151, %v1252
  %v1254 = vpop.f32.mrf.mxu0
  %v1255 = vpop.f32.mrf.mxu0
  %v1256 = vadd.f32 %v1156, %v1255
  %v1257 = vpop.f32.mrf.mxu0
  %1258 = vmatprep.mubr.bf16.mxu0 0
  %1259 = vmatmul.mubr.bf16.gmra.mxu0 %v1205
  %v1260 = vpop.f32.mrf.mxu0
  %v1261 = vadd.f32 %v1161, %v1260
  %v1262 = vpop.f32.mrf.mxu0
  %v1263 = vpop.f32.mrf.mxu0
  %v1264 = vadd.f32 %v1166, %v1263
  %v1265 = vpop.f32.mrf.mxu0
  %1266 = vmatprep.mubr.bf16.mxu0 0
  %1267 = vmatmul.mubr.bf16.gmra.mxu0 %v1208
  %v1268 = vpop.f32.mrf.mxu0
  %v1269 = vadd.f32 %v1171, %v1268
  %v1270 = vpop.f32.mrf.mxu0
  %v1271 = vpop.f32.mrf.mxu0
  %v1272 = vadd.f32 %v1176, %v1271
  %v1273 = vpop.f32.mrf.mxu0
  %1274 = vdwg.mxu0
  %s1275 = scalar_lea.vmem %s2, 192
  %v1276 = vld [vmem:[%s1275] sm:$0xf]
  %v1277 = vld [vmem:[%s1275 + $0x4] sm:$0xf]
  %v1278 = vld [vmem:[%s1275 + $0x8] sm:$0xf]
  %v1279 = vld [vmem:[%s1275 + $0xc] sm:$0xf]
  %v1280 = vld [vmem:[%s1275 + $0x10] sm:$0xf]
  %v1281 = vld [vmem:[%s1275 + $0x14] sm:$0xf]
  %v1282 = vld [vmem:[%s1275 + $0x18] sm:$0xf]
  %v1283 = vld [vmem:[%s1275 + $0x1c] sm:$0xf]
  %v1284 = vpack.c.bf16 %v1248, %v1245
  %v1285 = vpack.c.bf16 %v1256, %v1253
  %v1286 = vpack.c.bf16 %v1264, %v1261
  %v1287 = vpack.c.bf16 %v1272, %v1269
  %s1288 = scalar_lea.vmem %s3, 448
  %v1289 = vld [vmem:[%s1288] sm:$0xff]
  %v1290 = vld [vmem:[%s1288 + $0x8] sm:$0xff]
  %v1291 = vld [vmem:[%s1288 + $0x10] sm:$0xff]
  %v1292 = vld [vmem:[%s1288 + $0x18] sm:$0xff]
  %v1293 = vld [vmem:[%s1288 + $0x20] sm:$0xff]
  %v1294 = vld [vmem:[%s1288 + $0x28] sm:$0xff]
  %v1295 = vld [vmem:[%s1288 + $0x30] sm:$0xff]
  %v1296 = vld [vmem:[%s1288 + $0x38] sm:$0xff]
  %1298 = vset.pattern.permute.xlu0 0
  %1299 = vperm.xlu0 %1298, %v1289
  %v1300 = vpop.permute.xlu0 %1299
  %1303 = vset.pattern.permute.xlu0 0
  %1304 = vperm.xlu0 %1303, %v1290
  %v1305 = vpop.permute.xlu0 %1304
  %1308 = vset.pattern.permute.xlu0 0
  %1309 = vperm.xlu0 %1308, %v1291
  %v1310 = vpop.permute.xlu0 %1309
  %1313 = vset.pattern.permute.xlu0 0
  %1314 = vperm.xlu0 %1313, %v1292
  %v1315 = vpop.permute.xlu0 %1314
  %1318 = vset.pattern.permute.xlu0 0
  %1319 = vperm.xlu0 %1318, %v1293
  %v1320 = vpop.permute.xlu0 %1319
  %1323 = vset.pattern.permute.xlu0 0
  %1324 = vperm.xlu0 %1323, %v1294
  %v1325 = vpop.permute.xlu0 %1324
  %1328 = vset.pattern.permute.xlu0 0
  %1329 = vperm.xlu0 %1328, %v1295
  %v1330 = vpop.permute.xlu0 %1329
  %1333 = vset.pattern.permute.xlu0 0
  %1334 = vperm.xlu0 %1333, %v1296
  %v1335 = vpop.permute.xlu0 %1334
  %v1345 = vunpack.c.l.b16 %v1276
  %v1346 = vunpack.c.l.b16 %v1277
  %v1347 = vunpack.c.l.b16 %v1278
  %v1348 = vunpack.c.l.b16 %v1279
  %v1349 = vunpack.c.l.b16 %v1280
  %v1350 = vunpack.c.l.b16 %v1281
  %v1351 = vunpack.c.l.b16 %v1282
  %v1352 = vunpack.c.l.b16 %v1283
  %v1353 = vpack.c.b16 %v1346, %v1345
  %v1354 = vpack.c.b16 %v1348, %v1347
  %v1355 = vpack.c.b16 %v1350, %v1349
  %v1356 = vpack.c.b16 %v1352, %v1351
  %v1358 = vsel %vm273, %v1353, 0
  %v1361 = vsel %vm273, %v1354, 0
  %v1364 = vsel %vm273, %v1355, 0
  %v1367 = vsel %vm273, %v1356, 0
  %1369 = vmatprep.subr.bf16.mxu0 0
  %1370 = vmatpush1.bf16.msra.mxu0 0
  %1371 = vmatprep.subr.bf16.mxu0 0
  %1372 = vmatpush1.bf16.msra.mxu0 0
  %1373 = vmatprep.subr.bf16.mxu0 0
  %1374 = vmatpush1.bf16.msra.mxu0 0
  %1375 = vmatprep.subr.bf16.mxu0 0
  %1376 = vmatpush1.bf16.msra.mxu0 0
  %1377 = vmatprep.subr.bf16.mxu0 0
  %1378 = vmatpush1.bf16.msra.mxu0 %v1287
  %1379 = vmatprep.subr.bf16.mxu0 0
  %1380 = vmatpush1.bf16.msra.mxu0 %v1286
  %1381 = vmatprep.subr.bf16.mxu0 0
  %1382 = vmatpush1.bf16.msra.mxu0 %v1285
  %1383 = vmatprep.subr.bf16.mxu0 0
  %1384 = vmatpush1.bf16.msra.mxu0 %v1284
  %1385 = vmatprep.subr.bf16.mxu0 0
  %1386 = vmatpush2.bf16.msra.mxu0 0
  %1387 = vmatprep.subr.bf16.mxu0 0
  %1388 = vmatpush2.bf16.msra.mxu0 0
  %1389 = vmatprep.subr.bf16.mxu0 0
  %1390 = vmatpush2.bf16.msra.mxu0 0
  %1391 = vmatprep.subr.bf16.mxu0 0
  %1392 = vmatpush2.bf16.msra.mxu0 0
  %1393 = vmatprep.subr.bf16.mxu0 0
  %1394 = vmatpush2.bf16.msra.mxu0 0
  %1395 = vmatprep.subr.bf16.mxu0 0
  %1396 = vmatpush2.bf16.msra.mxu0 0
  %1397 = vmatprep.subr.bf16.mxu0 0
  %1398 = vmatpush2.bf16.msra.mxu0 0
  %1399 = vmatprep.subr.bf16.mxu0 0
  %1400 = vmatpush2.bf16.msra.mxu0 0
  %1401 = vmatprep.mubr.bf16.mxu0 0
  %1402 = vmatmul.mubr.bf16.gmra.mxu0 %v1358
  %v1403 = vpop.f32.mrf.mxu0
  %v1404 = vadd.f32 %v1300, %v1403
  %v1405 = vpop.f32.mrf.mxu0
  %v1406 = vpop.f32.mrf.mxu0
  %v1407 = vadd.f32 %v1305, %v1406
  %v1408 = vpop.f32.mrf.mxu0
  %1409 = vmatprep.mubr.bf16.mxu0 0
  %1410 = vmatmul.mubr.bf16.gmra.mxu0 %v1361
  %v1411 = vpop.f32.mrf.mxu0
  %v1412 = vadd.f32 %v1310, %v1411
  %v1413 = vpop.f32.mrf.mxu0
  %v1414 = vpop.f32.mrf.mxu0
  %v1415 = vadd.f32 %v1315, %v1414
  %v1416 = vpop.f32.mrf.mxu0
  %1417 = vmatprep.mubr.bf16.mxu0 0
  %1418 = vmatmul.mubr.bf16.gmra.mxu0 %v1364
  %v1419 = vpop.f32.mrf.mxu0
  %v1420 = vadd.f32 %v1320, %v1419
  %v1421 = vpop.f32.mrf.mxu0
  %v1422 = vpop.f32.mrf.mxu0
  %v1423 = vadd.f32 %v1325, %v1422
  %v1424 = vpop.f32.mrf.mxu0
  %1425 = vmatprep.mubr.bf16.mxu0 0
  %1426 = vmatmul.mubr.bf16.gmra.mxu0 %v1367
  %v1427 = vpop.f32.mrf.mxu0
  %v1428 = vadd.f32 %v1330, %v1427
  %v1429 = vpop.f32.mrf.mxu0
  %v1430 = vpop.f32.mrf.mxu0
  %v1431 = vadd.f32 %v1335, %v1430
  %v1432 = vpop.f32.mrf.mxu0
  %1433 = vdwg.mxu0
  %v1434 = vadd.f32 %v1404, %v585
  %v1435 = vadd.f32 %v1407, %v588
  %v1436 = vadd.f32 %v1412, %v591
  %v1437 = vadd.f32 %v1415, %v594
  %v1438 = vadd.f32 %v1420, %v597
  %v1439 = vadd.f32 %v1423, %v600
  %v1440 = vadd.f32 %v1428, %v603
  %v1441 = vadd.f32 %v1431, %v606
  %v1442 = vmax.f32 %v1434, 0.0
  %v1443 = vmax.f32 %v1435, 0.0
  %v1444 = vmax.f32 %v1436, 0.0
  %v1445 = vmax.f32 %v1437, 0.0
  %v1446 = vmax.f32 %v1438, 0.0
  %v1447 = vmax.f32 %v1439, 0.0
  %v1448 = vmax.f32 %v1440, 0.0
  %v1449 = vmax.f32 %v1441, 0.0
  %s1450 = scalar_lea.vmem %s2, 224
  %v1451 = vld [vmem:[%s1450] sm:$0xf]
  %v1452 = vld [vmem:[%s1450 + $0x4] sm:$0xf]
  %v1453 = vld [vmem:[%s1450 + $0x8] sm:$0xf]
  %v1454 = vld [vmem:[%s1450 + $0xc] sm:$0xf]
  %v1455 = vld [vmem:[%s1450 + $0x10] sm:$0xf]
  %v1456 = vld [vmem:[%s1450 + $0x14] sm:$0xf]
  %v1457 = vld [vmem:[%s1450 + $0x18] sm:$0xf]
  %v1458 = vld [vmem:[%s1450 + $0x1c] sm:$0xf]
  %v1459 = vpack.c.bf16 %v1443, %v1442
  %v1460 = vpack.c.bf16 %v1445, %v1444
  %v1461 = vpack.c.bf16 %v1447, %v1446
  %v1462 = vpack.c.bf16 %v1449, %v1448
  %s1463 = scalar_lea.vmem %s3, 512
  %v1464 = vld [vmem:[%s1463] sm:$0xff]
  %v1465 = vld [vmem:[%s1463 + $0x8] sm:$0xff]
  %v1466 = vld [vmem:[%s1463 + $0x10] sm:$0xff]
  %v1467 = vld [vmem:[%s1463 + $0x18] sm:$0xff]
  %v1468 = vld [vmem:[%s1463 + $0x20] sm:$0xff]
  %v1469 = vld [vmem:[%s1463 + $0x28] sm:$0xff]
  %v1470 = vld [vmem:[%s1463 + $0x30] sm:$0xff]
  %v1471 = vld [vmem:[%s1463 + $0x38] sm:$0xff]
  %1473 = vset.pattern.permute.xlu0 0
  %1474 = vperm.xlu0 %1473, %v1464
  %v1475 = vpop.permute.xlu0 %1474
  %1478 = vset.pattern.permute.xlu0 0
  %1479 = vperm.xlu0 %1478, %v1465
  %v1480 = vpop.permute.xlu0 %1479
  %1483 = vset.pattern.permute.xlu0 0
  %1484 = vperm.xlu0 %1483, %v1466
  %v1485 = vpop.permute.xlu0 %1484
  %1488 = vset.pattern.permute.xlu0 0
  %1489 = vperm.xlu0 %1488, %v1467
  %v1490 = vpop.permute.xlu0 %1489
  %1493 = vset.pattern.permute.xlu0 0
  %1494 = vperm.xlu0 %1493, %v1468
  %v1495 = vpop.permute.xlu0 %1494
  %1498 = vset.pattern.permute.xlu0 0
  %1499 = vperm.xlu0 %1498, %v1469
  %v1500 = vpop.permute.xlu0 %1499
  %1503 = vset.pattern.permute.xlu0 0
  %1504 = vperm.xlu0 %1503, %v1470
  %v1505 = vpop.permute.xlu0 %1504
  %1508 = vset.pattern.permute.xlu0 0
  %1509 = vperm.xlu0 %1508, %v1471
  %v1510 = vpop.permute.xlu0 %1509
  %v1520 = vunpack.c.l.b16 %v1451
  %v1521 = vunpack.c.l.b16 %v1452
  %v1522 = vunpack.c.l.b16 %v1453
  %v1523 = vunpack.c.l.b16 %v1454
  %v1524 = vunpack.c.l.b16 %v1455
  %v1525 = vunpack.c.l.b16 %v1456
  %v1526 = vunpack.c.l.b16 %v1457
  %v1527 = vunpack.c.l.b16 %v1458
  %v1528 = vpack.c.b16 %v1521, %v1520
  %v1529 = vpack.c.b16 %v1523, %v1522
  %v1530 = vpack.c.b16 %v1525, %v1524
  %v1531 = vpack.c.b16 %v1527, %v1526
  %v1533 = vsel %vm273, %v1528, 0
  %v1536 = vsel %vm273, %v1529, 0
  %v1539 = vsel %vm273, %v1530, 0
  %v1542 = vsel %vm273, %v1531, 0
  %1544 = vmatprep.subr.bf16.mxu0 0
  %1545 = vmatpush1.bf16.msra.mxu0 0
  %1546 = vmatprep.subr.bf16.mxu0 0
  %1547 = vmatpush1.bf16.msra.mxu0 0
  %1548 = vmatprep.subr.bf16.mxu0 0
  %1549 = vmatpush1.bf16.msra.mxu0 0
  %1550 = vmatprep.subr.bf16.mxu0 0
  %1551 = vmatpush1.bf16.msra.mxu0 0
  %1552 = vmatprep.subr.bf16.mxu0 0
  %1553 = vmatpush1.bf16.msra.mxu0 %v1462
  %1554 = vmatprep.subr.bf16.mxu0 0
  %1555 = vmatpush1.bf16.msra.mxu0 %v1461
  %1556 = vmatprep.subr.bf16.mxu0 0
  %1557 = vmatpush1.bf16.msra.mxu0 %v1460
  %1558 = vmatprep.subr.bf16.mxu0 0
  %1559 = vmatpush1.bf16.msra.mxu0 %v1459
  %1560 = vmatprep.subr.bf16.mxu0 0
  %1561 = vmatpush2.bf16.msra.mxu0 0
  %1562 = vmatprep.subr.bf16.mxu0 0
  %1563 = vmatpush2.bf16.msra.mxu0 0
  %1564 = vmatprep.subr.bf16.mxu0 0
  %1565 = vmatpush2.bf16.msra.mxu0 0
  %1566 = vmatprep.subr.bf16.mxu0 0
  %1567 = vmatpush2.bf16.msra.mxu0 0
  %1568 = vmatprep.subr.bf16.mxu0 0
  %1569 = vmatpush2.bf16.msra.mxu0 0
  %1570 = vmatprep.subr.bf16.mxu0 0
  %1571 = vmatpush2.bf16.msra.mxu0 0
  %1572 = vmatprep.subr.bf16.mxu0 0
  %1573 = vmatpush2.bf16.msra.mxu0 0
  %1574 = vmatprep.subr.bf16.mxu0 0
  %1575 = vmatpush2.bf16.msra.mxu0 0
  %1576 = vmatprep.mubr.bf16.mxu0 0
  %1577 = vmatmul.mubr.bf16.gmra.mxu0 %v1533
  %v1578 = vpop.f32.mrf.mxu0
  %v1579 = vadd.f32 %v1475, %v1578
  %v1580 = vpop.f32.mrf.mxu0
  %v1581 = vpop.f32.mrf.mxu0
  %v1582 = vadd.f32 %v1480, %v1581
  %v1583 = vpop.f32.mrf.mxu0
  %1584 = vmatprep.mubr.bf16.mxu0 0
  %1585 = vmatmul.mubr.bf16.gmra.mxu0 %v1536
  %v1586 = vpop.f32.mrf.mxu0
  %v1587 = vadd.f32 %v1485, %v1586
  %v1588 = vpop.f32.mrf.mxu0
  %v1589 = vpop.f32.mrf.mxu0
  %v1590 = vadd.f32 %v1490, %v1589
  %v1591 = vpop.f32.mrf.mxu0
  %1592 = vmatprep.mubr.bf16.mxu0 0
  %1593 = vmatmul.mubr.bf16.gmra.mxu0 %v1539
  %v1594 = vpop.f32.mrf.mxu0
  %v1595 = vadd.f32 %v1495, %v1594
  %v1596 = vpop.f32.mrf.mxu0
  %v1597 = vpop.f32.mrf.mxu0
  %v1598 = vadd.f32 %v1500, %v1597
  %v1599 = vpop.f32.mrf.mxu0
  %1600 = vmatprep.mubr.bf16.mxu0 0
  %1601 = vmatmul.mubr.bf16.gmra.mxu0 %v1542
  %v1602 = vpop.f32.mrf.mxu0
  %v1603 = vadd.f32 %v1505, %v1602
  %v1604 = vpop.f32.mrf.mxu0
  %v1605 = vpop.f32.mrf.mxu0
  %v1606 = vadd.f32 %v1510, %v1605
  %v1607 = vpop.f32.mrf.mxu0
  %1608 = vdwg.mxu0
  %v1609 = vadd.f32 %v1579, %v1245
  %v1610 = vadd.f32 %v1582, %v1248
  %v1611 = vadd.f32 %v1587, %v1253
  %v1612 = vadd.f32 %v1590, %v1256
  %v1613 = vadd.f32 %v1595, %v1261
  %v1614 = vadd.f32 %v1598, %v1264
  %v1615 = vadd.f32 %v1603, %v1269
  %v1616 = vadd.f32 %v1606, %v1272
  %s1617 = scalar_lea.vmem %s2, 256
  %v1618 = vld [vmem:[%s1617] sm:$0xf]
  %v1619 = vld [vmem:[%s1617 + $0x4] sm:$0xf]
  %v1620 = vld [vmem:[%s1617 + $0x8] sm:$0xf]
  %v1621 = vld [vmem:[%s1617 + $0xc] sm:$0xf]
  %v1622 = vld [vmem:[%s1617 + $0x10] sm:$0xf]
  %v1623 = vld [vmem:[%s1617 + $0x14] sm:$0xf]
  %v1624 = vld [vmem:[%s1617 + $0x18] sm:$0xf]
  %v1625 = vld [vmem:[%s1617 + $0x1c] sm:$0xf]
  %v1626 = vpack.c.bf16 %v1610, %v1609
  %v1627 = vpack.c.bf16 %v1612, %v1611
  %v1628 = vpack.c.bf16 %v1614, %v1613
  %v1629 = vpack.c.bf16 %v1616, %v1615
  %s1630 = scalar_lea.vmem %s3, 576
  %v1631 = vld [vmem:[%s1630] sm:$0xff]
  %v1632 = vld [vmem:[%s1630 + $0x8] sm:$0xff]
  %v1633 = vld [vmem:[%s1630 + $0x10] sm:$0xff]
  %v1634 = vld [vmem:[%s1630 + $0x18] sm:$0xff]
  %v1635 = vld [vmem:[%s1630 + $0x20] sm:$0xff]
  %v1636 = vld [vmem:[%s1630 + $0x28] sm:$0xff]
  %v1637 = vld [vmem:[%s1630 + $0x30] sm:$0xff]
  %v1638 = vld [vmem:[%s1630 + $0x38] sm:$0xff]
  %1640 = vset.pattern.permute.xlu0 0
  %1641 = vperm.xlu0 %1640, %v1631
  %v1642 = vpop.permute.xlu0 %1641
  %1645 = vset.pattern.permute.xlu0 0
  %1646 = vperm.xlu0 %1645, %v1632
  %v1647 = vpop.permute.xlu0 %1646
  %1650 = vset.pattern.permute.xlu0 0
  %1651 = vperm.xlu0 %1650, %v1633
  %v1652 = vpop.permute.xlu0 %1651
  %1655 = vset.pattern.permute.xlu0 0
  %1656 = vperm.xlu0 %1655, %v1634
  %v1657 = vpop.permute.xlu0 %1656
  %1660 = vset.pattern.permute.xlu0 0
  %1661 = vperm.xlu0 %1660, %v1635
  %v1662 = vpop.permute.xlu0 %1661
  %1665 = vset.pattern.permute.xlu0 0
  %1666 = vperm.xlu0 %1665, %v1636
  %v1667 = vpop.permute.xlu0 %1666
  %1670 = vset.pattern.permute.xlu0 0
  %1671 = vperm.xlu0 %1670, %v1637
  %v1672 = vpop.permute.xlu0 %1671
  %1675 = vset.pattern.permute.xlu0 0
  %1676 = vperm.xlu0 %1675, %v1638
  %v1677 = vpop.permute.xlu0 %1676
  %v1687 = vunpack.c.l.b16 %v1618
  %v1688 = vunpack.c.l.b16 %v1619
  %v1689 = vunpack.c.l.b16 %v1620
  %v1690 = vunpack.c.l.b16 %v1621
  %v1691 = vunpack.c.l.b16 %v1622
  %v1692 = vunpack.c.l.b16 %v1623
  %v1693 = vunpack.c.l.b16 %v1624
  %v1694 = vunpack.c.l.b16 %v1625
  %v1695 = vpack.c.b16 %v1688, %v1687
  %v1696 = vpack.c.b16 %v1690, %v1689
  %v1697 = vpack.c.b16 %v1692, %v1691
  %v1698 = vpack.c.b16 %v1694, %v1693
  %v1700 = vsel %vm273, %v1695, 0
  %v1703 = vsel %vm273, %v1696, 0
  %v1706 = vsel %vm273, %v1697, 0
  %v1709 = vsel %vm273, %v1698, 0
  %1711 = vmatprep.subr.bf16.mxu0 0
  %1712 = vmatpush1.bf16.msra.mxu0 0
  %1713 = vmatprep.subr.bf16.mxu0 0
  %1714 = vmatpush1.bf16.msra.mxu0 0
  %1715 = vmatprep.subr.bf16.mxu0 0
  %1716 = vmatpush1.bf16.msra.mxu0 0
  %1717 = vmatprep.subr.bf16.mxu0 0
  %1718 = vmatpush1.bf16.msra.mxu0 0
  %1719 = vmatprep.subr.bf16.mxu0 0
  %1720 = vmatpush1.bf16.msra.mxu0 %v1629
  %1721 = vmatprep.subr.bf16.mxu0 0
  %1722 = vmatpush1.bf16.msra.mxu0 %v1628
  %1723 = vmatprep.subr.bf16.mxu0 0
  %1724 = vmatpush1.bf16.msra.mxu0 %v1627
  %1725 = vmatprep.subr.bf16.mxu0 0
  %1726 = vmatpush1.bf16.msra.mxu0 %v1626
  %1727 = vmatprep.subr.bf16.mxu0 0
  %1728 = vmatpush2.bf16.msra.mxu0 0
  %1729 = vmatprep.subr.bf16.mxu0 0
  %1730 = vmatpush2.bf16.msra.mxu0 0
  %1731 = vmatprep.subr.bf16.mxu0 0
  %1732 = vmatpush2.bf16.msra.mxu0 0
  %1733 = vmatprep.subr.bf16.mxu0 0
  %1734 = vmatpush2.bf16.msra.mxu0 0
  %1735 = vmatprep.subr.bf16.mxu0 0
  %1736 = vmatpush2.bf16.msra.mxu0 0
  %1737 = vmatprep.subr.bf16.mxu0 0
  %1738 = vmatpush2.bf16.msra.mxu0 0
  %1739 = vmatprep.subr.bf16.mxu0 0
  %1740 = vmatpush2.bf16.msra.mxu0 0
  %1741 = vmatprep.subr.bf16.mxu0 0
  %1742 = vmatpush2.bf16.msra.mxu0 0
  %1743 = vmatprep.mubr.bf16.mxu0 0
  %1744 = vmatmul.mubr.bf16.gmra.mxu0 %v1700
  %v1745 = vpop.f32.mrf.mxu0
  %v1746 = vadd.f32 %v1642, %v1745
  %v1747 = vpop.f32.mrf.mxu0
  %v1748 = vpop.f32.mrf.mxu0
  %v1749 = vadd.f32 %v1647, %v1748
  %v1750 = vpop.f32.mrf.mxu0
  %1751 = vmatprep.mubr.bf16.mxu0 0
  %1752 = vmatmul.mubr.bf16.gmra.mxu0 %v1703
  %v1753 = vpop.f32.mrf.mxu0
  %v1754 = vadd.f32 %v1652, %v1753
  %v1755 = vpop.f32.mrf.mxu0
  %v1756 = vpop.f32.mrf.mxu0
  %v1757 = vadd.f32 %v1657, %v1756
  %v1758 = vpop.f32.mrf.mxu0
  %1759 = vmatprep.mubr.bf16.mxu0 0
  %1760 = vmatmul.mubr.bf16.gmra.mxu0 %v1706
  %v1761 = vpop.f32.mrf.mxu0
  %v1762 = vadd.f32 %v1662, %v1761
  %v1763 = vpop.f32.mrf.mxu0
  %v1764 = vpop.f32.mrf.mxu0
  %v1765 = vadd.f32 %v1667, %v1764
  %v1766 = vpop.f32.mrf.mxu0
  %1767 = vmatprep.mubr.bf16.mxu0 0
  %1768 = vmatmul.mubr.bf16.gmra.mxu0 %v1709
  %v1769 = vpop.f32.mrf.mxu0
  %v1770 = vadd.f32 %v1672, %v1769
  %v1771 = vpop.f32.mrf.mxu0
  %v1772 = vpop.f32.mrf.mxu0
  %v1773 = vadd.f32 %v1677, %v1772
  %v1774 = vpop.f32.mrf.mxu0
  %1775 = vdwg.mxu0
  %v1776 = vmax.f32 %v1746, 0.0
  %v1777 = vmax.f32 %v1749, 0.0
  %v1778 = vmax.f32 %v1754, 0.0
  %v1779 = vmax.f32 %v1757, 0.0
  %v1780 = vmax.f32 %v1762, 0.0
  %v1781 = vmax.f32 %v1765, 0.0
  %v1782 = vmax.f32 %v1770, 0.0
  %v1783 = vmax.f32 %v1773, 0.0
  %s1784 = scalar_lea.vmem %s2, 288
  %v1785 = vld [vmem:[%s1784] sm:$0xf]
  %v1786 = vld [vmem:[%s1784 + $0x4] sm:$0xf]
  %v1787 = vld [vmem:[%s1784 + $0x8] sm:$0xf]
  %v1788 = vld [vmem:[%s1784 + $0xc] sm:$0xf]
  %v1789 = vld [vmem:[%s1784 + $0x10] sm:$0xf]
  %v1790 = vld [vmem:[%s1784 + $0x14] sm:$0xf]
  %v1791 = vld [vmem:[%s1784 + $0x18] sm:$0xf]
  %v1792 = vld [vmem:[%s1784 + $0x1c] sm:$0xf]
  %v1793 = vpack.c.bf16 %v1777, %v1776
  %v1794 = vpack.c.bf16 %v1779, %v1778
  %v1795 = vpack.c.bf16 %v1781, %v1780
  %v1796 = vpack.c.bf16 %v1783, %v1782
  %s1797 = scalar_lea.vmem %s3, 640
  %v1798 = vld [vmem:[%s1797] sm:$0xff]
  %v1799 = vld [vmem:[%s1797 + $0x8] sm:$0xff]
  %v1800 = vld [vmem:[%s1797 + $0x10] sm:$0xff]
  %v1801 = vld [vmem:[%s1797 + $0x18] sm:$0xff]
  %v1802 = vld [vmem:[%s1797 + $0x20] sm:$0xff]
  %v1803 = vld [vmem:[%s1797 + $0x28] sm:$0xff]
  %v1804 = vld [vmem:[%s1797 + $0x30] sm:$0xff]
  %v1805 = vld [vmem:[%s1797 + $0x38] sm:$0xff]
  %1807 = vset.pattern.permute.xlu0 0
  %1808 = vperm.xlu0 %1807, %v1798
  %v1809 = vpop.permute.xlu0 %1808
  %1812 = vset.pattern.permute.xlu0 0
  %1813 = vperm.xlu0 %1812, %v1799
  %v1814 = vpop.permute.xlu0 %1813
  %1817 = vset.pattern.permute.xlu0 0
  %1818 = vperm.xlu0 %1817, %v1800
  %v1819 = vpop.permute.xlu0 %1818
  %1822 = vset.pattern.permute.xlu0 0
  %1823 = vperm.xlu0 %1822, %v1801
  %v1824 = vpop.permute.xlu0 %1823
  %1827 = vset.pattern.permute.xlu0 0
  %1828 = vperm.xlu0 %1827, %v1802
  %v1829 = vpop.permute.xlu0 %1828
  %1832 = vset.pattern.permute.xlu0 0
  %1833 = vperm.xlu0 %1832, %v1803
  %v1834 = vpop.permute.xlu0 %1833
  %1837 = vset.pattern.permute.xlu0 0
  %1838 = vperm.xlu0 %1837, %v1804
  %v1839 = vpop.permute.xlu0 %1838
  %1841 = vset.pattern.permute.xlu0 0
  %1842 = vperm.xlu0 %1841, %v1805
  %v1843 = vpop.permute.xlu0 %1842
  %v1852 = vunpack.c.l.b16 %v1785
  %v1853 = vunpack.c.l.b16 %v1786
  %v1854 = vunpack.c.l.b16 %v1787
  %v1855 = vunpack.c.l.b16 %v1788
  %v1856 = vunpack.c.l.b16 %v1789
  %v1857 = vunpack.c.l.b16 %v1790
  %v1858 = vunpack.c.l.b16 %v1791
  %v1859 = vunpack.c.l.b16 %v1792
  %v1860 = vpack.c.b16 %v1853, %v1852
  %v1861 = vpack.c.b16 %v1855, %v1854
  %v1862 = vpack.c.b16 %v1857, %v1856
  %v1863 = vpack.c.b16 %v1859, %v1858
  %v1865 = vsel %vm273, %v1860, 0
  %v1868 = vsel %vm273, %v1861, 0
  %v1871 = vsel %vm273, %v1862, 0
  %v1874 = vsel %vm273, %v1863, 0
  %1876 = vmatprep.subr.bf16.mxu0 0
  %1877 = vmatpush1.bf16.msra.mxu0 0
  %1878 = vmatprep.subr.bf16.mxu0 0
  %1879 = vmatpush1.bf16.msra.mxu0 0
  %1880 = vmatprep.subr.bf16.mxu0 0
  %1881 = vmatpush1.bf16.msra.mxu0 0
  %1882 = vmatprep.subr.bf16.mxu0 0
  %1883 = vmatpush1.bf16.msra.mxu0 0
  %1884 = vmatprep.subr.bf16.mxu0 0
  %1885 = vmatpush1.bf16.msra.mxu0 %v1796
  %1886 = vmatprep.subr.bf16.mxu0 0
  %1887 = vmatpush1.bf16.msra.mxu0 %v1795
  %1888 = vmatprep.subr.bf16.mxu0 0
  %1889 = vmatpush1.bf16.msra.mxu0 %v1794
  %1890 = vmatprep.subr.bf16.mxu0 0
  %1891 = vmatpush1.bf16.msra.mxu0 %v1793
  %1892 = vmatprep.subr.bf16.mxu0 0
  %1893 = vmatpush2.bf16.msra.mxu0 0
  %1894 = vmatprep.subr.bf16.mxu0 0
  %1895 = vmatpush2.bf16.msra.mxu0 0
  %1896 = vmatprep.subr.bf16.mxu0 0
  %1897 = vmatpush2.bf16.msra.mxu0 0
  %1898 = vmatprep.subr.bf16.mxu0 0
  %1899 = vmatpush2.bf16.msra.mxu0 0
  %1900 = vmatprep.subr.bf16.mxu0 0
  %1901 = vmatpush2.bf16.msra.mxu0 0
  %1902 = vmatprep.subr.bf16.mxu0 0
  %1903 = vmatpush2.bf16.msra.mxu0 0
  %1904 = vmatprep.subr.bf16.mxu0 0
  %1905 = vmatpush2.bf16.msra.mxu0 0
  %1906 = vmatprep.subr.bf16.mxu0 0
  %1907 = vmatpush2.bf16.msra.mxu0 0
  %1908 = vmatprep.mubr.bf16.mxu0 0
  %1909 = vmatmul.mubr.bf16.gmra.mxu0 %v1865
  %v1910 = vpop.f32.mrf.mxu0
  %v1911 = vadd.f32 %v1809, %v1910
  %v1912 = vpop.f32.mrf.mxu0
  %v1913 = vpop.f32.mrf.mxu0
  %v1914 = vadd.f32 %v1814, %v1913
  %v1915 = vpop.f32.mrf.mxu0
  %1916 = vmatprep.mubr.bf16.mxu0 0
  %1917 = vmatmul.mubr.bf16.gmra.mxu0 %v1868
  %v1918 = vpop.f32.mrf.mxu0
  %v1919 = vadd.f32 %v1819, %v1918
  %v1920 = vpop.f32.mrf.mxu0
  %v1921 = vpop.f32.mrf.mxu0
  %v1922 = vadd.f32 %v1824, %v1921
  %v1923 = vpop.f32.mrf.mxu0
  %1924 = vmatprep.mubr.bf16.mxu0 0
  %1925 = vmatmul.mubr.bf16.gmra.mxu0 %v1871
  %v1926 = vpop.f32.mrf.mxu0
  %v1927 = vadd.f32 %v1829, %v1926
  %v1928 = vpop.f32.mrf.mxu0
  %v1929 = vpop.f32.mrf.mxu0
  %v1930 = vadd.f32 %v1834, %v1929
  %v1931 = vpop.f32.mrf.mxu0
  %1932 = vmatprep.mubr.bf16.mxu0 0
  %1933 = vmatmul.mubr.bf16.gmra.mxu0 %v1874
  %v1934 = vpop.f32.mrf.mxu0
  %v1935 = vpop.f32.mrf.mxu0
  %v1936 = vpop.f32.mrf.mxu0
  %v1937 = vpop.f32.mrf.mxu0
  %1938 = vdwg.mxu0
  %1939 = vst [vmem:[%s6] sm:$0xff] %v1911
  %1940 = vst [vmem:[%s6 + $0x8] sm:$0xff] %v1914
  %1941 = vst [vmem:[%s6 + $0x10] sm:$0xff] %v1919
  %1942 = vst [vmem:[%s6 + $0x18] sm:$0xff] %v1922
  %1943 = vst [vmem:[%s6 + $0x20] sm:$0xff] %v1927
  %1944 = vst [vmem:[%s6 + $0x28] sm:$0xff] %v1930
  // Predicated region
  $region26: #{causal_motion_forward.3} parent=0 // pred_check
    _
  $region27: #{causal_motion_forward.3} parent=0 // pred_check_branch
    %1946 = sbr.rel (0) target = $region29
  $region28: #{causal_motion_forward.3} parent=0 // pred_region
    _
  $region29: #{causal_motion_forward.3} parent=0 // pred_fallthru
    _
  // Predicated region
  $region30: #{causal_motion_forward.3} parent=0 // pred_check
    _
  $region31: #{causal_motion_forward.3} parent=0 // pred_check_branch
    %1948 = sbr.rel (0) target = $region33
  $region32: #{causal_motion_forward.3} parent=0 // pred_region
    _
  $region33: #{causal_motion_forward.3} parent=0 // pred_fallthru
    _

</llo_original>
